<compile_context>
chip_gen: v5e
topology: v5e:2x2
jax: 0.10.0
libtpu: 0.0.40
codegen_flags: <defaults>
</compile_context>

<pallas_src>
import jax
import jax.numpy as jnp
from jax.experimental import pallas as pl
from jax.experimental.pallas import tpu as pltpu


L = 16        # sequence length
C_IN = 16     # input feature channels
C1, C2, C3 = 64, 128, 128
K3 = 3 * C_IN  # stacked-tap input width for conv1


def _round_up(n, m):
    return ((n + m - 1) // m) * m


def cnn_kernel(x3_ref,
               w1_ref, s1_ref, t1_ref,
               w2_ref, s2_ref, t2_ref,
               w3_ref, b3_ref,
               fcw_ref, fcb_ref,
               o_ref):
    tb = x3_ref.shape[0]
    R = tb * L

    # ---- Conv1 (taps pre-stacked in the wrapper) -> BN1 (folded) -> ReLU ----
    x3 = x3_ref[...].reshape(R, K3)                              # (R, 48) bf16
    h1 = jnp.dot(x3, w1_ref[...], preferred_element_type=jnp.float32)
    h1 = jnp.maximum(h1 * s1_ref[...] + t1_ref[...], 0.0)        # (R, 64) f32

    # Per-row position inside each sample (l = row % L); used to zero the rows
    # that would otherwise read across a sample boundary after a roll.
    l_idx = jax.lax.broadcasted_iota(jnp.int32, (R, 1), 0) % L
    not_first = l_idx != 0            # rows where h[l-1] exists
    not_last = l_idx != (L - 1)       # rows where h[l+1] exists

    def conv3(h, w_ref_):
        """Conv1d(kernel=3, padding=1) over flattened (R, Cin) activations."""
        dt = w_ref_.dtype
        # tap 0 uses h[l-1]: roll rows down by 1, zero rows with l == 0.
        h_m1 = jnp.where(not_first, pltpu.roll(h, 1, 0), 0.0)
        # tap 2 uses h[l+1]: roll rows up by 1 (== R-1 down), zero l == L-1.
        h_p1 = jnp.where(not_last, pltpu.roll(h, R - 1, 0), 0.0)
        acc = jnp.dot(h_m1.astype(dt), w_ref_[0],
                      preferred_element_type=jnp.float32)
        acc = acc + jnp.dot(h.astype(dt), w_ref_[1],
                            preferred_element_type=jnp.float32)
        acc = acc + jnp.dot(h_p1.astype(dt), w_ref_[2],
                            preferred_element_type=jnp.float32)
        return acc                                               # (R, Cout) f32

    # ---- Conv2 -> BN2 (folded) -> ReLU ----
    h2 = jnp.maximum(conv3(h1, w2_ref) * s2_ref[...] + t2_ref[...], 0.0)
    # ---- Conv3 (bias deferred to after the pool) -> AdaptiveAvgPool1d(1) ----
    h3 = conv3(h2, w3_ref)                                       # (R, 128) f32
    pooled = jnp.sum(h3.reshape(tb, L, C3), axis=1) * (1.0 / L) + b3_ref[...]

    # ---- Linear(128 -> 1) + Sigmoid, on the VPU (lane reduction) ----
    logit = jnp.sum(pooled * fcw_ref[...], axis=-1)              # (tb,)
    logit = logit + fcb_ref[...]                                 # (1, tb)
    o_ref[...] = (1.0 / (1.0 + jnp.exp(-logit))).reshape(1, 1, tb)


def cnn_forward(x, params, *, block_b=128, use_bf16=True):
    """x: (B, L, 16) float32  ->  (B, 1) float32 in [0, 1]."""
    B = x.shape[0]
    (w1, s1, t1, w2, s2, t2, w3, b3, fcw, fcb) = params

    # Samples per grid step.  128 keeps the MXU's M dimension full and, for
    # realistic batches (B >= 256), leaves >= 2 grid steps so both v7x
    # TensorCores get work via dimension_semantics=("parallel",).
    tb = min(block_b, _round_up(B, 8))
    b_pad = _round_up(B, tb)
    if b_pad != B:
        x = jnp.pad(x, ((0, b_pad - B), (0, 0), (0, 0)))
    grid = (b_pad // tb,)

    wdt = jnp.bfloat16 if use_bf16 else jnp.float32

    # im2col for conv1 (kernel=3, padding=1) done once in plain JAX:
    # x3[:, l, :] = [x[l-1] | x[l] | x[l+1]]  (zeros at the boundaries).
    xm1 = jnp.pad(x, ((0, 0), (1, 0), (0, 0)))[:, :L, :]
    xp1 = jnp.pad(x, ((0, 0), (0, 1), (0, 0)))[:, 1:, :]
    x3 = jnp.concatenate([xm1, x, xp1], axis=-1).astype(wdt)     # (B, L, 48)

    w1c = w1.reshape(K3, C1).astype(wdt)   # tap-major rows match x3 layout
    w2c = w2.astype(wdt)
    w3c = w3.astype(wdt)

    def const(a):
        # Whole array, same block every step -> stays VMEM-resident.
        nd = a.ndim
        return pl.BlockSpec(a.shape, lambda b, nd=nd: (0,) * nd)

    out = pl.pallas_call(
        cnn_kernel,
        out_shape=jax.ShapeDtypeStruct((grid[0], 1, tb), jnp.float32),
        grid=grid,
        in_specs=[
            pl.BlockSpec((tb, L, K3), lambda b: (b, 0, 0)),   # x3, per block
            const(w1c), const(s1), const(t1),
            const(w2c), const(s2), const(t2),
            const(w3c), const(b3),
            const(fcw), const(fcb),
        ],
        out_specs=pl.BlockSpec((1, 1, tb), lambda b: (b, 0, 0)),  # lane-dense
        compiler_params=pltpu.CompilerParams(
            dimension_semantics=("parallel",)),
    )(x3, w1c, s1, t1, w2c, s2, t2, w3c, b3, fcw, fcb)
    return out.reshape(b_pad)[:B].reshape(B, 1)


def make_params(key):
    """Deterministic synthetic parameters (same shapes as the torch module)."""
    ks = jax.random.split(key, 12)
    eps = 1e-5

    def conv_w(k, cin, cout):
        # stored as (K=3, Cin, Cout) for the shifted-matmul formulation
        return jax.random.normal(k, (3, cin, cout), jnp.float32) * 0.1

    w1 = conv_w(ks[0], C_IN, C1)
    b1 = jax.random.normal(ks[1], (C1,), jnp.float32) * 0.1
    w2 = conv_w(ks[2], C1, C2)
    b2 = jax.random.normal(ks[3], (C2,), jnp.float32) * 0.1
    w3 = conv_w(ks[4], C2, C3)
    b3 = jax.random.normal(ks[5], (C3,), jnp.float32) * 0.1

    # BatchNorm1d params (inference mode): gamma, beta, running_mean/var
    g1 = 1.0 + 0.05 * jax.random.normal(ks[6], (C1,), jnp.float32)
    be1 = 0.05 * jax.random.normal(ks[7], (C1,), jnp.float32)
    m1 = jnp.zeros((C1,), jnp.float32)
    v1 = jnp.ones((C1,), jnp.float32)

    g2 = 1.0 + 0.05 * jax.random.normal(ks[8], (C2,), jnp.float32)
    be2 = 0.05 * jax.random.normal(ks[9], (C2,), jnp.float32)
    m2 = jnp.zeros((C2,), jnp.float32)
    v2 = jnp.ones((C2,), jnp.float32)

    # Fold conv bias + BN into per-channel scale/shift:
    #   bn(conv(x)+b) = scale * conv(x) + (scale*(b - mean) + beta)
    s1 = g1 / jnp.sqrt(v1 + eps)
    t1 = s1 * (b1 - m1) + be1
    s2 = g2 / jnp.sqrt(v2 + eps)
    t2 = s2 * (b2 - m2) + be2

    fcw = jax.random.normal(ks[10], (1, C3), jnp.float32) * 0.1
    fcb = jax.random.normal(ks[11], (1, 1), jnp.float32) * 0.1

    return (w1, s1.reshape(1, C1), t1.reshape(1, C1),
            w2, s2.reshape(1, C2), t2.reshape(1, C2),
            w3, b3.reshape(1, C3),
            fcw, fcb)


def cnn_reference(x, params, *, use_bf16=True):
    """Pure-JAX reference with identical math / matmul input precision."""
    (w1, s1, t1, w2, s2, t2, w3, b3, fcw, fcb) = params
    wdt = jnp.bfloat16 if use_bf16 else jnp.float32

    def conv3(h, w):                                  # h: (B, L, Cin) f32
        hp = jnp.pad(h, ((0, 0), (1, 1), (0, 0)))
        out = jnp.zeros(h.shape[:2] + (w.shape[2],), jnp.float32)
        for k in range(3):
            out = out + jnp.einsum(
                'blc,cd->bld',
                hp[:, k:k + h.shape[1], :].astype(wdt), w[k].astype(wdt),
                preferred_element_type=jnp.float32)
        return out

    h1 = jnp.maximum(conv3(x, w1) * s1 + t1, 0.0)
    h2 = jnp.maximum(conv3(h1, w2) * s2 + t2, 0.0)
    pooled = conv3(h2, w3).mean(axis=1) + b3          # (B, 128)
    logit = jnp.sum(pooled * fcw, axis=-1, keepdims=True) + fcb
    return 1.0 / (1.0 + jnp.exp(-logit))              # (B, 1)


if __name__ == "__main__":
    key = jax.random.PRNGKey(0)
    kx, kp = jax.random.split(key)

    B = 2
    x = jax.random.normal(kx, (B, L, C_IN), jnp.float32)   # (batch, seq, feat=16)
    params = make_params(kp)

    out = jax.block_until_ready(cnn_forward(x, params))
    ref = cnn_reference(x, params)

    assert out.shape == (B, 1)
    assert jnp.allclose(out, ref, atol=2e-3, rtol=0.0), (out, ref)
    print("KERNEL_OK")
</pallas_src>

<mosaic_0001>
module attributes {stable_mosaic.version = 11 : i64} {
  func.func @cnn_kernel(%arg0: i32, %arg1: memref<8x16x48xbf16, #tpu.memory_space<vmem>>, %arg2: memref<48x64xbf16, #tpu.memory_space<vmem>>, %arg3: memref<1x64xf32, #tpu.memory_space<vmem>>, %arg4: memref<1x64xf32, #tpu.memory_space<vmem>>, %arg5: memref<3x64x128xbf16, #tpu.memory_space<vmem>>, %arg6: memref<1x128xf32, #tpu.memory_space<vmem>>, %arg7: memref<1x128xf32, #tpu.memory_space<vmem>>, %arg8: memref<3x128x128xbf16, #tpu.memory_space<vmem>>, %arg9: memref<1x128xf32, #tpu.memory_space<vmem>>, %arg10: memref<1x128xf32, #tpu.memory_space<vmem>>, %arg11: memref<1x1xf32, #tpu.memory_space<vmem>>, %arg12: memref<1x1x8xf32, #tpu.memory_space<vmem>>) attributes {dimension_semantics = [#tpu.dimension_semantics<parallel>], iteration_bounds = array<i64: 1>, scalar_prefetch = 0 : i64, scratch_operands = 0 : i64, tpu.core_type = #tpu.core_type<tc>, window_params = [{transform_indices = @transform_0, window_bounds = array<i64: 8, 16, 48>}, {pipeline_mode = #tpu.pipeline_mode<synchronous>, transform_indices = @transform_1, window_bounds = array<i64: 48, 64>}, {pipeline_mode = #tpu.pipeline_mode<synchronous>, transform_indices = @transform_2, window_bounds = array<i64: 1, 64>}, {pipeline_mode = #tpu.pipeline_mode<synchronous>, transform_indices = @transform_3, window_bounds = array<i64: 1, 64>}, {pipeline_mode = #tpu.pipeline_mode<synchronous>, transform_indices = @transform_4, window_bounds = array<i64: 3, 64, 128>}, {pipeline_mode = #tpu.pipeline_mode<synchronous>, transform_indices = @transform_5, window_bounds = array<i64: 1, 128>}, {pipeline_mode = #tpu.pipeline_mode<synchronous>, transform_indices = @transform_6, window_bounds = array<i64: 1, 128>}, {pipeline_mode = #tpu.pipeline_mode<synchronous>, transform_indices = @transform_7, window_bounds = array<i64: 3, 128, 128>}, {pipeline_mode = #tpu.pipeline_mode<synchronous>, transform_indices = @transform_8, window_bounds = array<i64: 1, 128>}, {pipeline_mode = #tpu.pipeline_mode<synchronous>, transform_indices = @transform_9, window_bounds = array<i64: 1, 128>}, {pipeline_mode = #tpu.pipeline_mode<synchronous>, transform_indices = @transform_10, window_bounds = array<i64: 1, 1>}, {transform_indices = @transform_11, window_bounds = array<i64: 1, 1, 8>}]} {
    %c0 = arith.constant 0 : index
    %c0_0 = arith.constant 0 : index
    %c0_1 = arith.constant 0 : index
    %0 = vector.load %arg1[%c0, %c0_0, %c0_1] : memref<8x16x48xbf16, #tpu.memory_space<vmem>>, vector<8x16x48xbf16>
    %1 = vector.shape_cast %0 : vector<8x16x48xbf16> to vector<128x48xbf16>
    %c0_2 = arith.constant 0 : index
    %c0_3 = arith.constant 0 : index
    %2 = vector.load %arg2[%c0_2, %c0_3] : memref<48x64xbf16, #tpu.memory_space<vmem>>, vector<48x64xbf16>
    %cst = arith.constant dense<0.000000e+00> : vector<128x64xf32>
    %3 = tpu.matmul %1, %2, %cst {dimension_numbers = #tpu.dot_dimension_numbers<[1], [0], [0], [1], [0, 0, 1, 1], [], []>} : vector<128x48xbf16>, vector<48x64xbf16>, vector<128x64xf32> -> vector<128x64xf32>
    %c0_4 = arith.constant 0 : index
    %c0_5 = arith.constant 0 : index
    %4 = vector.load %arg3[%c0_4, %c0_5] : memref<1x64xf32, #tpu.memory_space<vmem>>, vector<1x64xf32>
    %5 = vector.broadcast %4 : vector<1x64xf32> to vector<128x64xf32>
    %6 = arith.mulf %3, %5 : vector<128x64xf32>
    %c0_6 = arith.constant 0 : index
    %c0_7 = arith.constant 0 : index
    %7 = vector.load %arg4[%c0_6, %c0_7] : memref<1x64xf32, #tpu.memory_space<vmem>>, vector<1x64xf32>
    %8 = vector.broadcast %7 : vector<1x64xf32> to vector<128x64xf32>
    %9 = arith.addf %6, %8 : vector<128x64xf32>
    %cst_8 = arith.constant 0.000000e+00 : f32
    %10 = vector.broadcast %cst_8 : f32 to vector<128x64xf32>
    %11 = arith.maximumf %9, %10 : vector<128x64xf32>
    %12 = tpu.iota {dimensions = array<i32: 0>} : vector<128x1xi32>
    %c16_i32 = arith.constant 16 : i32
    %c0_i32 = arith.constant 0 : i32
    %13 = arith.cmpi eq, %c16_i32, %c0_i32 : i32
    %c1_i32 = arith.constant 1 : i32
    %14 = arith.select %13, %c1_i32, %c16_i32 : i32
    %15 = vector.broadcast %14 : i32 to vector<128x1xi32>
    %16 = arith.remsi %12, %15 : vector<128x1xi32>
    %c0_i32_9 = arith.constant 0 : i32
    %17 = vector.broadcast %c0_i32_9 : i32 to vector<128x1xi32>
    %18 = arith.cmpi ne, %16, %17 : vector<128x1xi32>
    %c0_i32_10 = arith.constant 0 : i32
    %19 = vector.broadcast %c0_i32_10 : i32 to vector<128x1xi32>
    %20 = arith.cmpi slt, %16, %19 : vector<128x1xi32>
    %c0_i32_11 = arith.constant 0 : i32
    %21 = arith.cmpi slt, %14, %c0_i32_11 : i32
    %22 = vector.broadcast %21 : i1 to vector<128x1xi1>
    %23 = vector.broadcast %22 : vector<128x1xi1> to vector<128x1xi1>
    %24 = arith.xori %20, %23 : vector<128x1xi1>
    %25 = arith.andi %24, %18 : vector<128x1xi1>
    %26 = vector.broadcast %14 : i32 to vector<128x1xi32>
    %27 = arith.addi %16, %26 : vector<128x1xi32>
    %28 = arith.select %25, %27, %16 : vector<128x1xi1>, vector<128x1xi32>
    %c0_i32_12 = arith.constant 0 : i32
    %29 = vector.broadcast %c0_i32_12 : i32 to vector<128x1xi32>
    %30 = arith.cmpi ne, %28, %29 : vector<128x1xi32>
    %c15_i32 = arith.constant 15 : i32
    %31 = vector.broadcast %c15_i32 : i32 to vector<128x1xi32>
    %32 = arith.cmpi ne, %28, %31 : vector<128x1xi32>
    %c1_i32_13 = arith.constant 1 : i32
    %33 = tpu.dynamic_rotate %11 by %c1_i32_13 dim 0 : vector<128x64xf32>, i32 -> vector<128x64xf32>
    %cst_14 = arith.constant 0.000000e+00 : f32
    %34 = vector.shape_cast %30 : vector<128x1xi1> to vector<128x1xi1>
    %35 = vector.broadcast %34 : vector<128x1xi1> to vector<128x64xi1>
    %36 = vector.broadcast %cst_14 : f32 to vector<128x64xf32>
    %37 = arith.select %35, %33, %36 : vector<128x64xi1>, vector<128x64xf32>
    %c127_i32 = arith.constant 127 : i32
    %38 = tpu.dynamic_rotate %11 by %c127_i32 dim 0 : vector<128x64xf32>, i32 -> vector<128x64xf32>
    %cst_15 = arith.constant 0.000000e+00 : f32
    %39 = vector.shape_cast %32 : vector<128x1xi1> to vector<128x1xi1>
    %40 = vector.broadcast %39 : vector<128x1xi1> to vector<128x64xi1>
    %41 = vector.broadcast %cst_15 : f32 to vector<128x64xf32>
    %42 = arith.select %40, %38, %41 : vector<128x64xi1>, vector<128x64xf32>
    %43 = arith.truncf %37 : vector<128x64xf32> to vector<128x64xbf16>
    %c0_16 = arith.constant 0 : index
    %c0_17 = arith.constant 0 : index
    %c0_18 = arith.constant 0 : index
    %44 = vector.load %arg5[%c0_16, %c0_17, %c0_18] : memref<3x64x128xbf16, #tpu.memory_space<vmem>>, vector<1x64x128xbf16>
    %45 = vector.shape_cast %44 : vector<1x64x128xbf16> to vector<64x128xbf16>
    %cst_19 = arith.constant dense<0.000000e+00> : vector<128x128xf32>
    %46 = tpu.matmul %43, %45, %cst_19 {dimension_numbers = #tpu.dot_dimension_numbers<[1], [0], [0], [1], [0, 0, 1, 1], [], []>} : vector<128x64xbf16>, vector<64x128xbf16>, vector<128x128xf32> -> vector<128x128xf32>
    %47 = arith.truncf %11 : vector<128x64xf32> to vector<128x64xbf16>
    %c1 = arith.constant 1 : index
    %c0_20 = arith.constant 0 : index
    %c0_21 = arith.constant 0 : index
    %48 = vector.load %arg5[%c1, %c0_20, %c0_21] : memref<3x64x128xbf16, #tpu.memory_space<vmem>>, vector<1x64x128xbf16>
    %49 = vector.shape_cast %48 : vector<1x64x128xbf16> to vector<64x128xbf16>
    %cst_22 = arith.constant dense<0.000000e+00> : vector<128x128xf32>
    %50 = tpu.matmul %47, %49, %cst_22 {dimension_numbers = #tpu.dot_dimension_numbers<[1], [0], [0], [1], [0, 0, 1, 1], [], []>} : vector<128x64xbf16>, vector<64x128xbf16>, vector<128x128xf32> -> vector<128x128xf32>
    %51 = arith.addf %46, %50 : vector<128x128xf32>
    %52 = arith.truncf %42 : vector<128x64xf32> to vector<128x64xbf16>
    %c2 = arith.constant 2 : index
    %c0_23 = arith.constant 0 : index
    %c0_24 = arith.constant 0 : index
    %53 = vector.load %arg5[%c2, %c0_23, %c0_24] : memref<3x64x128xbf16, #tpu.memory_space<vmem>>, vector<1x64x128xbf16>
    %54 = vector.shape_cast %53 : vector<1x64x128xbf16> to vector<64x128xbf16>
    %cst_25 = arith.constant dense<0.000000e+00> : vector<128x128xf32>
    %55 = tpu.matmul %52, %54, %cst_25 {dimension_numbers = #tpu.dot_dimension_numbers<[1], [0], [0], [1], [0, 0, 1, 1], [], []>} : vector<128x64xbf16>, vector<64x128xbf16>, vector<128x128xf32> -> vector<128x128xf32>
    %56 = arith.addf %51, %55 : vector<128x128xf32>
    %c0_26 = arith.constant 0 : index
    %c0_27 = arith.constant 0 : index
    %57 = vector.load %arg6[%c0_26, %c0_27] : memref<1x128xf32, #tpu.memory_space<vmem>>, vector<1x128xf32>
    %58 = vector.broadcast %57 : vector<1x128xf32> to vector<128x128xf32>
    %59 = arith.mulf %56, %58 : vector<128x128xf32>
    %c0_28 = arith.constant 0 : index
    %c0_29 = arith.constant 0 : index
    %60 = vector.load %arg7[%c0_28, %c0_29] : memref<1x128xf32, #tpu.memory_space<vmem>>, vector<1x128xf32>
    %61 = vector.broadcast %60 : vector<1x128xf32> to vector<128x128xf32>
    %62 = arith.addf %59, %61 : vector<128x128xf32>
    %cst_30 = arith.constant 0.000000e+00 : f32
    %63 = vector.broadcast %cst_30 : f32 to vector<128x128xf32>
    %64 = arith.maximumf %62, %63 : vector<128x128xf32>
    %c1_i32_31 = arith.constant 1 : i32
    %65 = tpu.dynamic_rotate %64 by %c1_i32_31 dim 0 : vector<128x128xf32>, i32 -> vector<128x128xf32>
    %cst_32 = arith.constant 0.000000e+00 : f32
    %66 = vector.shape_cast %30 : vector<128x1xi1> to vector<128x1xi1>
    %67 = vector.broadcast %66 : vector<128x1xi1> to vector<128x128xi1>
    %68 = vector.broadcast %cst_32 : f32 to vector<128x128xf32>
    %69 = arith.select %67, %65, %68 : vector<128x128xi1>, vector<128x128xf32>
    %c127_i32_33 = arith.constant 127 : i32
    %70 = tpu.dynamic_rotate %64 by %c127_i32_33 dim 0 : vector<128x128xf32>, i32 -> vector<128x128xf32>
    %cst_34 = arith.constant 0.000000e+00 : f32
    %71 = vector.shape_cast %32 : vector<128x1xi1> to vector<128x1xi1>
    %72 = vector.broadcast %71 : vector<128x1xi1> to vector<128x128xi1>
    %73 = vector.broadcast %cst_34 : f32 to vector<128x128xf32>
    %74 = arith.select %72, %70, %73 : vector<128x128xi1>, vector<128x128xf32>
    %75 = arith.truncf %69 : vector<128x128xf32> to vector<128x128xbf16>
    %c0_35 = arith.constant 0 : index
    %c0_36 = arith.constant 0 : index
    %c0_37 = arith.constant 0 : index
    %76 = vector.load %arg8[%c0_35, %c0_36, %c0_37] : memref<3x128x128xbf16, #tpu.memory_space<vmem>>, vector<1x128x128xbf16>
    %77 = vector.shape_cast %76 : vector<1x128x128xbf16> to vector<128x128xbf16>
    %cst_38 = arith.constant dense<0.000000e+00> : vector<128x128xf32>
    %78 = tpu.matmul %75, %77, %cst_38 {dimension_numbers = #tpu.dot_dimension_numbers<[1], [0], [0], [1], [0, 0, 1, 1], [], []>} : vector<128x128xbf16>, vector<128x128xbf16>, vector<128x128xf32> -> vector<128x128xf32>
    %79 = arith.truncf %64 : vector<128x128xf32> to vector<128x128xbf16>
    %c1_39 = arith.constant 1 : index
    %c0_40 = arith.constant 0 : index
    %c0_41 = arith.constant 0 : index
    %80 = vector.load %arg8[%c1_39, %c0_40, %c0_41] : memref<3x128x128xbf16, #tpu.memory_space<vmem>>, vector<1x128x128xbf16>
    %81 = vector.shape_cast %80 : vector<1x128x128xbf16> to vector<128x128xbf16>
    %cst_42 = arith.constant dense<0.000000e+00> : vector<128x128xf32>
    %82 = tpu.matmul %79, %81, %cst_42 {dimension_numbers = #tpu.dot_dimension_numbers<[1], [0], [0], [1], [0, 0, 1, 1], [], []>} : vector<128x128xbf16>, vector<128x128xbf16>, vector<128x128xf32> -> vector<128x128xf32>
    %83 = arith.addf %78, %82 : vector<128x128xf32>
    %84 = arith.truncf %74 : vector<128x128xf32> to vector<128x128xbf16>
    %c2_43 = arith.constant 2 : index
    %c0_44 = arith.constant 0 : index
    %c0_45 = arith.constant 0 : index
    %85 = vector.load %arg8[%c2_43, %c0_44, %c0_45] : memref<3x128x128xbf16, #tpu.memory_space<vmem>>, vector<1x128x128xbf16>
    %86 = vector.shape_cast %85 : vector<1x128x128xbf16> to vector<128x128xbf16>
    %cst_46 = arith.constant dense<0.000000e+00> : vector<128x128xf32>
    %87 = tpu.matmul %84, %86, %cst_46 {dimension_numbers = #tpu.dot_dimension_numbers<[1], [0], [0], [1], [0, 0, 1, 1], [], []>} : vector<128x128xbf16>, vector<128x128xbf16>, vector<128x128xf32> -> vector<128x128xf32>
    %88 = arith.addf %83, %87 : vector<128x128xf32>
    %89 = vector.shape_cast %88 : vector<128x128xf32> to vector<8x16x128xf32>
    %cst_47 = arith.constant dense<0.000000e+00> : vector<8x128xf32>
    %90 = vector.multi_reduction <add>, %89, %cst_47 [1] : vector<8x16x128xf32> to vector<8x128xf32>
    %cst_48 = arith.constant 6.250000e-02 : f32
    %91 = vector.broadcast %cst_48 : f32 to vector<8x128xf32>
    %92 = arith.mulf %90, %91 : vector<8x128xf32>
    %c0_49 = arith.constant 0 : index
    %c0_50 = arith.constant 0 : index
    %93 = vector.load %arg9[%c0_49, %c0_50] : memref<1x128xf32, #tpu.memory_space<vmem>>, vector<1x128xf32>
    %94 = vector.broadcast %93 : vector<1x128xf32> to vector<8x128xf32>
    %95 = arith.addf %92, %94 : vector<8x128xf32>
    %c0_51 = arith.constant 0 : index
    %c0_52 = arith.constant 0 : index
    %96 = vector.load %arg10[%c0_51, %c0_52] : memref<1x128xf32, #tpu.memory_space<vmem>>, vector<1x128xf32>
    %97 = vector.broadcast %96 : vector<1x128xf32> to vector<8x128xf32>
    %98 = arith.mulf %95, %97 : vector<8x128xf32>
    %cst_53 = arith.constant dense<0.000000e+00> : vector<8xf32>
    %99 = vector.multi_reduction <add>, %98, %cst_53 [1] : vector<8x128xf32> to vector<8xf32>
    %c0_54 = arith.constant 0 : index
    %c0_55 = arith.constant 0 : index
    %100 = vector.load %arg11[%c0_54, %c0_55] : memref<1x1xf32, #tpu.memory_space<vmem>>, vector<1x1xf32>
    %101 = vector.shape_cast %99 : vector<8xf32> to vector<1x8xf32>
    %102 = vector.broadcast %100 : vector<1x1xf32> to vector<1x8xf32>
    %103 = arith.addf %101, %102 : vector<1x8xf32>
    %cst_56 = arith.constant 0.000000e+00 : f32
    %104 = vector.broadcast %cst_56 : f32 to vector<1x8xf32>
    %105 = arith.subf %104, %103 : vector<1x8xf32>
    %106 = math.exp %105 : vector<1x8xf32>
    %cst_57 = arith.constant 1.000000e+00 : f32
    %107 = vector.broadcast %cst_57 : f32 to vector<1x8xf32>
    %108 = arith.addf %107, %106 : vector<1x8xf32>
    %cst_58 = arith.constant 1.000000e+00 : f32
    %109 = vector.broadcast %cst_58 : f32 to vector<1x8xf32>
    %110 = arith.divf %109, %108 : vector<1x8xf32>
    %111 = vector.shape_cast %110 : vector<1x8xf32> to vector<1x1x8xf32>
    %c0_59 = arith.constant 0 : index
    %c0_60 = arith.constant 0 : index
    %c0_61 = arith.constant 0 : index
    %112 = vector.load %arg12[%c0_59, %c0_60, %c0_61] : memref<1x1x8xf32, #tpu.memory_space<vmem>>, vector<1x1x8xf32>
    tpu.vector_store %arg12[%c0_59, %c0_60, %c0_61], %111 {strides = array<i32>} : memref<1x1x8xf32, #tpu.memory_space<vmem>>, vector<1x1x8xf32>,
    return
  }
  func.func @transform_0(%arg0: i32) -> (i32, i32, i32) {
    %c0_i32 = arith.constant 0 : i32
    %c0_i32_0 = arith.constant 0 : i32
    %c0_i32_1 = arith.constant 0 : i32
    return %arg0, %c0_i32, %c0_i32_0 : i32, i32, i32
  }
  func.func @transform_1(%arg0: i32) -> (i32, i32) {
    %c0_i32 = arith.constant 0 : i32
    %c0_i32_0 = arith.constant 0 : i32
    %c0_i32_1 = arith.constant 0 : i32
    return %c0_i32, %c0_i32_0 : i32, i32
  }
  func.func @transform_2(%arg0: i32) -> (i32, i32) {
    %c0_i32 = arith.constant 0 : i32
    %c0_i32_0 = arith.constant 0 : i32
    %c0_i32_1 = arith.constant 0 : i32
    return %c0_i32, %c0_i32_0 : i32, i32
  }
  func.func @transform_3(%arg0: i32) -> (i32, i32) {
    %c0_i32 = arith.constant 0 : i32
    %c0_i32_0 = arith.constant 0 : i32
    %c0_i32_1 = arith.constant 0 : i32
    return %c0_i32, %c0_i32_0 : i32, i32
  }
  func.func @transform_4(%arg0: i32) -> (i32, i32, i32) {
    %c0_i32 = arith.constant 0 : i32
    %c0_i32_0 = arith.constant 0 : i32
    %c0_i32_1 = arith.constant 0 : i32
    %c0_i32_2 = arith.constant 0 : i32
    return %c0_i32, %c0_i32_0, %c0_i32_1 : i32, i32, i32
  }
  func.func @transform_5(%arg0: i32) -> (i32, i32) {
    %c0_i32 = arith.constant 0 : i32
    %c0_i32_0 = arith.constant 0 : i32
    %c0_i32_1 = arith.constant 0 : i32
    return %c0_i32, %c0_i32_0 : i32, i32
  }
  func.func @transform_6(%arg0: i32) -> (i32, i32) {
    %c0_i32 = arith.constant 0 : i32
    %c0_i32_0 = arith.constant 0 : i32
    %c0_i32_1 = arith.constant 0 : i32
    return %c0_i32, %c0_i32_0 : i32, i32
  }
  func.func @transform_7(%arg0: i32) -> (i32, i32, i32) {
    %c0_i32 = arith.constant 0 : i32
    %c0_i32_0 = arith.constant 0 : i32
    %c0_i32_1 = arith.constant 0 : i32
    %c0_i32_2 = arith.constant 0 : i32
    return %c0_i32, %c0_i32_0, %c0_i32_1 : i32, i32, i32
  }
  func.func @transform_8(%arg0: i32) -> (i32, i32) {
    %c0_i32 = arith.constant 0 : i32
    %c0_i32_0 = arith.constant 0 : i32
    %c0_i32_1 = arith.constant 0 : i32
    return %c0_i32, %c0_i32_0 : i32, i32
  }
  func.func @transform_9(%arg0: i32) -> (i32, i32) {
    %c0_i32 = arith.constant 0 : i32
    %c0_i32_0 = arith.constant 0 : i32
    %c0_i32_1 = arith.constant 0 : i32
    return %c0_i32, %c0_i32_0 : i32, i32
  }
  func.func @transform_10(%arg0: i32) -> (i32, i32) {
    %c0_i32 = arith.constant 0 : i32
    %c0_i32_0 = arith.constant 0 : i32
    %c0_i32_1 = arith.constant 0 : i32
    return %c0_i32, %c0_i32_0 : i32, i32
  }
  func.func @transform_11(%arg0: i32) -> (i32, i32, i32) {
    %c0_i32 = arith.constant 0 : i32
    %c0_i32_0 = arith.constant 0 : i32
    %c0_i32_1 = arith.constant 0 : i32
    return %arg0, %c0_i32, %c0_i32_0 : i32, i32, i32
  }
}

</mosaic_0001>

<llo_original>
// kernel: tpu_custom_call.1
$region0: #{tpu_custom_call.1}
  #allocation0 [shape = 'u32[]', space=smem, size = 0x4, offset = 0x4, fixed_abs, tag = 'smem constant byte address 0x4 - core index']
  #allocation1 [shape = 'u32[72,128]{1,0:T(1,128)}', space=vmem, size = 0x9000, scoped, tag = 'internal scratch']
  #allocation2 [shape = 'f32[1,1]{1,0:T(1,128)S(1)}', space=vmem, size = 0x200, scoped, tag = 'scoped memory for tpu_custom_call.1']
  %s0 = inlined_call_operand.hbm [shape: bf16[8,16,48], index: 0, kind: input, shape index: {}]
  %s1 = inlined_call_operand.hbm [shape: bf16[48,64], index: 1, kind: input, shape index: {}]
  %s2 = inlined_call_operand.vmem [shape: f32[1,64], index: 2, kind: input, shape index: {}]
  %s3 = inlined_call_operand.vmem [shape: f32[1,64], index: 3, kind: input, shape index: {}]
  %s4 = inlined_call_operand.hbm [shape: bf16[3,64,128], index: 4, kind: input, shape index: {}]
  %s5 = inlined_call_operand.vmem [shape: f32[1,128], index: 5, kind: input, shape index: {}]
  %s6 = inlined_call_operand.vmem [shape: f32[1,128], index: 6, kind: input, shape index: {}]
  %s7 = inlined_call_operand.hbm [shape: bf16[3,128,128], index: 7, kind: input, shape index: {}]
  %s8 = inlined_call_operand.vmem [shape: f32[1,128], index: 8, kind: input, shape index: {}]
  %s9 = inlined_call_operand.vmem [shape: f32[1,128], index: 9, kind: input, shape index: {}]
  %s10 = inlined_call_operand.<no memory space> [shape: f32[1,1], index: 10, kind: input, shape index: {}]
  %s11 = inlined_call_operand.hbm [shape: f32[1,1,8], index: 11, kind: output, shape index: {}]
  %s12 = sld [smem:[#allocation0]]
  $region70: #{tpu_custom_call.1} parent=0
    _
  %s14 = ssub.s32 1, %s12
  %s15 = scalar_select 0, %s14, %s12
  %v16 = vstv %s10
  %17 = vst [vmem:[#allocation2] sm:$0x1] %v16
  $region1: #{tpu_custom_call.1} parent=0
    #allocation3 [shape = 'u8[32768]{0}', space=vmem, size = 0x8000, scoped, tag = 'input window, operand 0, single buffered']
    #allocation4 [shape = 's32[1]{0}', space=sflag, size = 0x4, scoped, tag = 'scoped memory for tpu_custom_call.1']
    #allocation5 [shape = 's32[1]{0}', space=sflag, size = 0x4, scoped, tag = 'scoped memory for tpu_custom_call.1']
    #allocation6 [shape = 'u8[12288]{0}', space=vmem, size = 0x3000, scoped, tag = 'input window, operand 1, single buffered']
    #allocation7 [shape = 's32[1]{0}', space=sflag, size = 0x4, scoped, tag = 'scoped memory for tpu_custom_call.1']
    #allocation8 [shape = 'u8[49152]{0}', space=vmem, size = 0xc000, scoped, tag = 'input window, operand 4, single buffered']
    #allocation9 [shape = 'u8[98304]{0}', space=vmem, size = 0x18000, scoped, tag = 'input window, operand 7, single buffered']
    #allocation10 [shape = 's32[1]{0}', space=sflag, size = 0x4, scoped, tag = 'scoped memory for tpu_custom_call.1']
    #allocation11 [shape = 'u8[512]{0}', space=vmem, size = 0x400, scoped, tag = 'output window, operand 0, single buffered']
    %18 = vsyncpa [#allocation4], 0
    %19 = vsyncpa [#allocation7], 0
    %20 = vsyncpa [#allocation10], 0
    %21 = vsyncpa [#allocation5], 0
    // Predicated region
    $region2: #{tpu_custom_call.1} parent=1 // pred_check
      _
    $region3: #{tpu_custom_call.1} parent=1 // pred_check_branch
      %23 = sbr.rel (0) target = $region5
    $region4: #{tpu_custom_call.1} parent=1 // pred_region
      %25 = vsyncadd [#allocation4], 0
      %s26 = sshll.u32 %s0, 4
      %s27 = int_to_ptr.hbm [resolvable:$true] %s26
      %s28 = sshll.u32 [#allocation3], 4
      %s29 = int_to_ptr.vmem [resolvable:$true] %s28
      %34 = dma.hbm_to_vmem [thread:$0]  %s27, 1024, %s29, [#allocation4], 64, 64, 4
    $region5: #{tpu_custom_call.1} parent=1 // pred_fallthru
      _
    // Predicated region
    $region6: #{tpu_custom_call.1} parent=1 // pred_check
      _
    $region7: #{tpu_custom_call.1} parent=1 // pred_check_branch
      %36 = sbr.rel (0) target = $region9
    $region8: #{tpu_custom_call.1} parent=1 // pred_region
      %38 = vsyncadd [#allocation7], 0
      %s39 = sshll.u32 %s1, 4
      %s40 = int_to_ptr.hbm [resolvable:$true] %s39
      %s41 = sshll.u32 [#allocation6], 4
      %s42 = int_to_ptr.vmem [resolvable:$true] %s41
      %47 = dma.hbm_to_vmem [thread:$0]  %s40, 384, %s42, [#allocation7], 64, 64, 4
    $region9: #{tpu_custom_call.1} parent=1 // pred_fallthru
      _
    // Predicated region
    $region10: #{tpu_custom_call.1} parent=1 // pred_check
      _
    $region11: #{tpu_custom_call.1} parent=1 // pred_check_branch
      %49 = sbr.rel (0) target = $region13
    $region12: #{tpu_custom_call.1} parent=1 // pred_region
      _
    $region13: #{tpu_custom_call.1} parent=1 // pred_fallthru
      _
    // Predicated region
    $region14: #{tpu_custom_call.1} parent=1 // pred_check
      _
    $region15: #{tpu_custom_call.1} parent=1 // pred_check_branch
      %51 = sbr.rel (0) target = $region17
    $region16: #{tpu_custom_call.1} parent=1 // pred_region
      _
    $region17: #{tpu_custom_call.1} parent=1 // pred_fallthru
      _
    // Predicated region
    $region18: #{tpu_custom_call.1} parent=1 // pred_check
      _
    $region19: #{tpu_custom_call.1} parent=1 // pred_check_branch
      %53 = sbr.rel (0) target = $region21
    $region20: #{tpu_custom_call.1} parent=1 // pred_region
      %55 = vsyncadd [#allocation7], 0
      %s56 = sshll.u32 %s4, 4
      %s57 = int_to_ptr.hbm [resolvable:$true] %s56
      %s58 = sshll.u32 [#allocation8], 4
      %s59 = int_to_ptr.vmem [resolvable:$true] %s58
      %64 = dma.hbm_to_vmem [thread:$0]  %s57, 1536, %s59, [#allocation7], 64, 64, 4
    $region21: #{tpu_custom_call.1} parent=1 // pred_fallthru
      _
    // Predicated region
    $region22: #{tpu_custom_call.1} parent=1 // pred_check
      _
    $region23: #{tpu_custom_call.1} parent=1 // pred_check_branch
      %66 = sbr.rel (0) target = $region25
    $region24: #{tpu_custom_call.1} parent=1 // pred_region
      _
    $region25: #{tpu_custom_call.1} parent=1 // pred_fallthru
      _
    // Predicated region
    $region26: #{tpu_custom_call.1} parent=1 // pred_check
      _
    $region27: #{tpu_custom_call.1} parent=1 // pred_check_branch
      %68 = sbr.rel (0) target = $region29
    $region28: #{tpu_custom_call.1} parent=1 // pred_region
      _
    $region29: #{tpu_custom_call.1} parent=1 // pred_fallthru
      _
    // Predicated region
    $region30: #{tpu_custom_call.1} parent=1 // pred_check
      _
    $region31: #{tpu_custom_call.1} parent=1 // pred_check_branch
      %70 = sbr.rel (0) target = $region33
    $region32: #{tpu_custom_call.1} parent=1 // pred_region
      %72 = vsyncadd [#allocation10], 0
      %s73 = sshll.u32 %s7, 4
      %s74 = int_to_ptr.hbm [resolvable:$true] %s73
      %s75 = sshll.u32 [#allocation9], 4
      %s76 = int_to_ptr.vmem [resolvable:$true] %s75
      %81 = dma.hbm_to_vmem [thread:$0]  %s74, 3072, %s76, [#allocation10], 64, 64, 4
    $region33: #{tpu_custom_call.1} parent=1 // pred_fallthru
      _
    // Predicated region
    $region34: #{tpu_custom_call.1} parent=1 // pred_check
      _
    $region35: #{tpu_custom_call.1} parent=1 // pred_check_branch
      %83 = sbr.rel (0) target = $region37
    $region36: #{tpu_custom_call.1} parent=1 // pred_region
      _
    $region37: #{tpu_custom_call.1} parent=1 // pred_fallthru
      _
    // Predicated region
    $region38: #{tpu_custom_call.1} parent=1 // pred_check
      _
    $region39: #{tpu_custom_call.1} parent=1 // pred_check_branch
      %85 = sbr.rel (0) target = $region41
    $region40: #{tpu_custom_call.1} parent=1 // pred_region
      _
    $region41: #{tpu_custom_call.1} parent=1 // pred_fallthru
      _
    // Predicated region
    $region42: #{tpu_custom_call.1} parent=1 // pred_check
      _
    $region43: #{tpu_custom_call.1} parent=1 // pred_check_branch
      %87 = sbr.rel (0) target = $region45
    $region44: #{tpu_custom_call.1} parent=1 // pred_region
      _
    $region45: #{tpu_custom_call.1} parent=1 // pred_fallthru
      _
    // Predicated region
    $region46: #{tpu_custom_call.1} parent=1 // pred_check
      _
    $region47: #{tpu_custom_call.1} parent=1 // pred_check_branch
      %89 = sbr.rel (0) target = $region49
    $region48: #{tpu_custom_call.1} parent=1 // pred_region
      %91 = dma.done [#allocation4], 1024
    $region49: #{tpu_custom_call.1} parent=1 // pred_fallthru
      _
    // Predicated region
    $region50: #{tpu_custom_call.1} parent=1 // pred_check
      _
    $region51: #{tpu_custom_call.1} parent=1 // pred_check_branch
      %93 = sbr.rel (0) target = $region53
    $region52: #{tpu_custom_call.1} parent=1 // pred_region
      %95 = dma.done [#allocation7], 384
    $region53: #{tpu_custom_call.1} parent=1 // pred_fallthru
      _
    // Predicated region
    $region54: #{tpu_custom_call.1} parent=1 // pred_check
      _
    $region55: #{tpu_custom_call.1} parent=1 // pred_check_branch
      %97 = sbr.rel (0) target = $region57
    $region56: #{tpu_custom_call.1} parent=1 // pred_region
      %99 = dma.done [#allocation7], 1536
    $region57: #{tpu_custom_call.1} parent=1 // pred_fallthru
      _
    // Predicated region
    $region58: #{tpu_custom_call.1} parent=1 // pred_check
      _
    $region59: #{tpu_custom_call.1} parent=1 // pred_check_branch
      %101 = sbr.rel (0) target = $region61
    $region60: #{tpu_custom_call.1} parent=1 // pred_region
      %103 = dma.done [#allocation10], 3072
    $region61: #{tpu_custom_call.1} parent=1 // pred_fallthru
      _
    %v105 = vld [vmem:[#allocation3] sm:$0xf]
    %v106 = vld [vmem:[#allocation3 + $0x4] sm:$0xf]
    %v107 = vld [vmem:[#allocation3 + $0x8] sm:$0xf]
    %v108 = vld [vmem:[#allocation3 + $0xc] sm:$0xf]
    %v109 = vld [vmem:[#allocation3 + $0x10] sm:$0xf]
    %v110 = vld [vmem:[#allocation3 + $0x14] sm:$0xf]
    %v111 = vld [vmem:[#allocation3 + $0x18] sm:$0xf]
    %v112 = vld [vmem:[#allocation3 + $0x1c] sm:$0xf]
    %v113 = vld [vmem:[#allocation3 + $0x20] sm:$0xf]
    %v114 = vld [vmem:[#allocation3 + $0x24] sm:$0xf]
    %v115 = vld [vmem:[#allocation3 + $0x28] sm:$0xf]
    %v116 = vld [vmem:[#allocation3 + $0x2c] sm:$0xf]
    %v117 = vld [vmem:[#allocation3 + $0x30] sm:$0xf]
    %v118 = vld [vmem:[#allocation3 + $0x34] sm:$0xf]
    %v119 = vld [vmem:[#allocation3 + $0x38] sm:$0xf]
    %v120 = vld [vmem:[#allocation3 + $0x3c] sm:$0xf]
    %v121 = vld [vmem:[#allocation6] sm:$0xf]
    %v122 = vld [vmem:[#allocation6 + $0x4] sm:$0xf]
    %v123 = vld [vmem:[#allocation6 + $0x8] sm:$0xf]
    %v124 = vld [vmem:[#allocation6 + $0xc] sm:$0xf]
    %v125 = vld [vmem:[#allocation6 + $0x10] sm:$0xf]
    %v126 = vld [vmem:[#allocation6 + $0x14] sm:$0xf]
    %v143 = vunpack.c.l.b16 %v105
    %v144 = vunpack.c.l.b16 %v106
    %v145 = vunpack.c.l.b16 %v107
    %v146 = vunpack.c.l.b16 %v108
    %v147 = vunpack.c.l.b16 %v109
    %v148 = vunpack.c.l.b16 %v110
    %v149 = vunpack.c.l.b16 %v111
    %v150 = vunpack.c.l.b16 %v112
    %v151 = vunpack.c.l.b16 %v113
    %v152 = vunpack.c.l.b16 %v114
    %v153 = vunpack.c.l.b16 %v115
    %v154 = vunpack.c.l.b16 %v116
    %v155 = vunpack.c.l.b16 %v117
    %v156 = vunpack.c.l.b16 %v118
    %v157 = vunpack.c.l.b16 %v119
    %v158 = vunpack.c.l.b16 %v120
    %v159 = vpack.c.b16 %v144, %v143
    %v160 = vpack.c.b16 %v146, %v145
    %v161 = vpack.c.b16 %v148, %v147
    %v162 = vpack.c.b16 %v150, %v149
    %v163 = vpack.c.b16 %v152, %v151
    %v164 = vpack.c.b16 %v154, %v153
    %v165 = vpack.c.b16 %v156, %v155
    %v166 = vpack.c.b16 %v158, %v157
    %v173 = vunpack.c.l.b16 %v121
    %v174 = vunpack.c.l.b16 %v122
    %v175 = vunpack.c.l.b16 %v123
    %v176 = vunpack.c.l.b16 %v124
    %v177 = vunpack.c.l.b16 %v125
    %v178 = vunpack.c.l.b16 %v126
    %v179 = vpack.c.b16 %v174, %v173
    %v180 = vpack.c.b16 %v176, %v175
    %v181 = vpack.c.b16 %v178, %v177
    %vm185 = vcmask 392192
    %v187 = vsel %vm185, %v159, 0
    %v190 = vsel %vm185, %v160, 0
    %v193 = vsel %vm185, %v161, 0
    %v196 = vsel %vm185, %v162, 0
    %v199 = vsel %vm185, %v163, 0
    %v202 = vsel %vm185, %v164, 0
    %v205 = vsel %vm185, %v165, 0
    %v208 = vsel %vm185, %v166, 0
    %210 = vmatpush.bf16.msra.mxu0 0
    %211 = vmatpush.bf16.msra.mxu0 0
    %212 = vmatpush.bf16.msra.mxu0 0
    %213 = vmatpush.bf16.msra.mxu0 0
    %214 = vmatpush.bf16.msra.mxu0 0
    %215 = vmatpush.bf16.msra.mxu0 %v181
    %216 = vmatpush.bf16.msra.mxu0 %v180
    %217 = vmatpush.bf16.msra.mxu0 %v179
    %218 = vmatmul.bf16.gmra.mxu0 %v187
    %v219 = vpop.f32.mrf.mxu0
    %v220 = vadd.f32 0.0, %v219
    %v221 = vpop.f32.mrf.mxu0
    %v222 = vadd.f32 0.0, %v221
    %223 = vmatmul.bf16.gmra.mxu0 %v190
    %v224 = vpop.f32.mrf.mxu0
    %v225 = vadd.f32 0.0, %v224
    %v226 = vpop.f32.mrf.mxu0
    %v227 = vadd.f32 0.0, %v226
    %228 = vmatmul.bf16.gmra.mxu0 %v193
    %v229 = vpop.f32.mrf.mxu0
    %v230 = vadd.f32 0.0, %v229
    %v231 = vpop.f32.mrf.mxu0
    %v232 = vadd.f32 0.0, %v231
    %233 = vmatmul.bf16.gmra.mxu0 %v196
    %v234 = vpop.f32.mrf.mxu0
    %v235 = vadd.f32 0.0, %v234
    %v236 = vpop.f32.mrf.mxu0
    %v237 = vadd.f32 0.0, %v236
    %238 = vmatmul.bf16.gmra.mxu0 %v199
    %v239 = vpop.f32.mrf.mxu0
    %v240 = vadd.f32 0.0, %v239
    %v241 = vpop.f32.mrf.mxu0
    %v242 = vadd.f32 0.0, %v241
    %243 = vmatmul.bf16.gmra.mxu0 %v202
    %v244 = vpop.f32.mrf.mxu0
    %v245 = vadd.f32 0.0, %v244
    %v246 = vpop.f32.mrf.mxu0
    %v247 = vadd.f32 0.0, %v246
    %248 = vmatmul.bf16.gmra.mxu0 %v205
    %v249 = vpop.f32.mrf.mxu0
    %v250 = vadd.f32 0.0, %v249
    %v251 = vpop.f32.mrf.mxu0
    %v252 = vadd.f32 0.0, %v251
    %253 = vmatmul.bf16.gmra.mxu0 %v208
    %v254 = vpop.f32.mrf.mxu0
    %v255 = vadd.f32 0.0, %v254
    %v256 = vpop.f32.mrf.mxu0
    %v257 = vadd.f32 0.0, %v256
    %258 = vdwg.mxu0
    %v259 = vld [vmem:[%s2] sm:$0x1]
    %v261 = vperm.slane %v259, 0
    %v263 = vmul.f32 %v220, %v261
    %v264 = vmul.f32 %v222, %v261
    %v265 = vmul.f32 %v225, %v261
    %v266 = vmul.f32 %v227, %v261
    %v267 = vmul.f32 %v230, %v261
    %v268 = vmul.f32 %v232, %v261
    %v269 = vmul.f32 %v235, %v261
    %v270 = vmul.f32 %v237, %v261
    %v271 = vmul.f32 %v240, %v261
    %v272 = vmul.f32 %v242, %v261
    %v273 = vmul.f32 %v245, %v261
    %v274 = vmul.f32 %v247, %v261
    %v275 = vmul.f32 %v250, %v261
    %v276 = vmul.f32 %v252, %v261
    %v277 = vmul.f32 %v255, %v261
    %v278 = vmul.f32 %v257, %v261
    %v279 = vld [vmem:[%s3] sm:$0x1]
    %v281 = vperm.slane %v279, 0
    %v283 = vadd.f32 %v263, %v281
    %v284 = vadd.f32 %v264, %v281
    %v285 = vadd.f32 %v265, %v281
    %v286 = vadd.f32 %v266, %v281
    %v287 = vadd.f32 %v267, %v281
    %v288 = vadd.f32 %v268, %v281
    %v289 = vadd.f32 %v269, %v281
    %v290 = vadd.f32 %v270, %v281
    %v291 = vadd.f32 %v271, %v281
    %v292 = vadd.f32 %v272, %v281
    %v293 = vadd.f32 %v273, %v281
    %v294 = vadd.f32 %v274, %v281
    %v295 = vadd.f32 %v275, %v281
    %v296 = vadd.f32 %v276, %v281
    %v297 = vadd.f32 %v277, %v281
    %v298 = vadd.f32 %v278, %v281
    %v299 = vmax.f32 %v283, 0.0
    %v300 = vmax.f32 %v284, 0.0
    %v301 = vmax.f32 %v285, 0.0
    %v302 = vmax.f32 %v286, 0.0
    %v303 = vmax.f32 %v287, 0.0
    %v304 = vmax.f32 %v288, 0.0
    %v305 = vmax.f32 %v289, 0.0
    %v306 = vmax.f32 %v290, 0.0
    %v307 = vmax.f32 %v291, 0.0
    %v308 = vmax.f32 %v292, 0.0
    %v309 = vmax.f32 %v293, 0.0
    %v310 = vmax.f32 %v294, 0.0
    %v311 = vmax.f32 %v295, 0.0
    %v312 = vmax.f32 %v296, 0.0
    %v313 = vmax.f32 %v297, 0.0
    %v314 = vmax.f32 %v298, 0.0
    %v315 = vlaneseq
    %v316 = vshrl.u32 %v315, 7
    %v317 = vadd.s32 %v316, 8
    %v318 = vadd.s32 %v316, 16
    %v319 = vadd.s32 %v316, 24
    %v320 = vadd.s32 %v316, 32
    %v321 = vadd.s32 %v316, 40
    %v322 = vadd.s32 %v316, 48
    %v323 = vadd.s32 %v316, 56
    %v324 = vadd.s32 %v316, 64
    %v325 = vadd.s32 %v316, 72
    %v326 = vadd.s32 %v316, 80
    %v327 = vadd.s32 %v316, 88
    %v328 = vadd.s32 %v316, 96
    %v329 = vadd.s32 %v316, 104
    %v330 = vadd.s32 %v316, 112
    %v331 = vadd.s32 %v316, 120
    %vm332 = vcmp.lt.s32.totalorder %v316, 0
    %v333 = vsub.s32 0, %v316
    %v334 = vsel %vm332, %v333, %v316
    %v335 = vshrl.u32 %v334, 4
    %v336 = vand.u32 %v334, 15
    %v337 = vsub.s32 0, %v336
    %v338 = vsel %vm332, %v337, %v336
    %vm339 = vcmp.lt.s32.totalorder %v317, 0
    %v340 = vsub.s32 0, %v317
    %v341 = vsel %vm339, %v340, %v317
    %v342 = vshrl.u32 %v341, 4
    %v343 = vand.u32 %v341, 15
    %v344 = vsub.s32 0, %v343
    %v345 = vsel %vm339, %v344, %v343
    %vm346 = vcmp.lt.s32.totalorder %v318, 0
    %v347 = vsub.s32 0, %v318
    %v348 = vsel %vm346, %v347, %v318
    %v349 = vshrl.u32 %v348, 4
    %v350 = vand.u32 %v348, 15
    %v351 = vsub.s32 0, %v350
    %v352 = vsel %vm346, %v351, %v350
    %vm353 = vcmp.lt.s32.totalorder %v319, 0
    %v354 = vsub.s32 0, %v319
    %v355 = vsel %vm353, %v354, %v319
    %v356 = vshrl.u32 %v355, 4
    %v357 = vand.u32 %v355, 15
    %v358 = vsub.s32 0, %v357
    %v359 = vsel %vm353, %v358, %v357
    %vm360 = vcmp.lt.s32.totalorder %v320, 0
    %v361 = vsub.s32 0, %v320
    %v362 = vsel %vm360, %v361, %v320
    %v363 = vshrl.u32 %v362, 4
    %v364 = vand.u32 %v362, 15
    %v365 = vsub.s32 0, %v364
    %v366 = vsel %vm360, %v365, %v364
    %vm367 = vcmp.lt.s32.totalorder %v321, 0
    %v368 = vsub.s32 0, %v321
    %v369 = vsel %vm367, %v368, %v321
    %v370 = vshrl.u32 %v369, 4
    %v371 = vand.u32 %v369, 15
    %v372 = vsub.s32 0, %v371
    %v373 = vsel %vm367, %v372, %v371
    %vm374 = vcmp.lt.s32.totalorder %v322, 0
    %v375 = vsub.s32 0, %v322
    %v376 = vsel %vm374, %v375, %v322
    %v377 = vshrl.u32 %v376, 4
    %v378 = vand.u32 %v376, 15
    %v379 = vsub.s32 0, %v378
    %v380 = vsel %vm374, %v379, %v378
    %vm381 = vcmp.lt.s32.totalorder %v323, 0
    %v382 = vsub.s32 0, %v323
    %v383 = vsel %vm381, %v382, %v323
    %v384 = vshrl.u32 %v383, 4
    %v385 = vand.u32 %v383, 15
    %v386 = vsub.s32 0, %v385
    %v387 = vsel %vm381, %v386, %v385
    %vm388 = vcmp.lt.s32.totalorder %v324, 0
    %v389 = vsub.s32 0, %v324
    %v390 = vsel %vm388, %v389, %v324
    %v391 = vshrl.u32 %v390, 4
    %v392 = vand.u32 %v390, 15
    %v393 = vsub.s32 0, %v392
    %v394 = vsel %vm388, %v393, %v392
    %vm395 = vcmp.lt.s32.totalorder %v325, 0
    %v396 = vsub.s32 0, %v325
    %v397 = vsel %vm395, %v396, %v325
    %v398 = vshrl.u32 %v397, 4
    %v399 = vand.u32 %v397, 15
    %v400 = vsub.s32 0, %v399
    %v401 = vsel %vm395, %v400, %v399
    %vm402 = vcmp.lt.s32.totalorder %v326, 0
    %v403 = vsub.s32 0, %v326
    %v404 = vsel %vm402, %v403, %v326
    %v405 = vshrl.u32 %v404, 4
    %v406 = vand.u32 %v404, 15
    %v407 = vsub.s32 0, %v406
    %v408 = vsel %vm402, %v407, %v406
    %vm409 = vcmp.lt.s32.totalorder %v327, 0
    %v410 = vsub.s32 0, %v327
    %v411 = vsel %vm409, %v410, %v327
    %v412 = vshrl.u32 %v411, 4
    %v413 = vand.u32 %v411, 15
    %v414 = vsub.s32 0, %v413
    %v415 = vsel %vm409, %v414, %v413
    %vm416 = vcmp.lt.s32.totalorder %v328, 0
    %v417 = vsub.s32 0, %v328
    %v418 = vsel %vm416, %v417, %v328
    %v419 = vshrl.u32 %v418, 4
    %v420 = vand.u32 %v418, 15
    %v421 = vsub.s32 0, %v420
    %v422 = vsel %vm416, %v421, %v420
    %vm423 = vcmp.lt.s32.totalorder %v329, 0
    %v424 = vsub.s32 0, %v329
    %v425 = vsel %vm423, %v424, %v329
    %v426 = vshrl.u32 %v425, 4
    %v427 = vand.u32 %v425, 15
    %v428 = vsub.s32 0, %v427
    %v429 = vsel %vm423, %v428, %v427
    %vm430 = vcmp.lt.s32.totalorder %v330, 0
    %v431 = vsub.s32 0, %v330
    %v432 = vsel %vm430, %v431, %v330
    %v433 = vshrl.u32 %v432, 4
    %v434 = vand.u32 %v432, 15
    %v435 = vsub.s32 0, %v434
    %v436 = vsel %vm430, %v435, %v434
    %vm437 = vcmp.lt.s32.totalorder %v331, 0
    %v438 = vsub.s32 0, %v331
    %v439 = vsel %vm437, %v438, %v331
    %v440 = vshrl.u32 %v439, 4
    %v441 = vand.u32 %v439, 15
    %v442 = vsub.s32 0, %v441
    %v443 = vsel %vm437, %v442, %v441
    %vm444 = vcmp.ne.s32.totalorder %v338, 0
    %vm445 = vcmp.ne.s32.totalorder %v345, 0
    %vm446 = vcmp.ne.s32.totalorder %v352, 0
    %vm447 = vcmp.ne.s32.totalorder %v359, 0
    %vm448 = vcmp.ne.s32.totalorder %v366, 0
    %vm449 = vcmp.ne.s32.totalorder %v373, 0
    %vm450 = vcmp.ne.s32.totalorder %v380, 0
    %vm451 = vcmp.ne.s32.totalorder %v387, 0
    %vm452 = vcmp.ne.s32.totalorder %v394, 0
    %vm453 = vcmp.ne.s32.totalorder %v401, 0
    %vm454 = vcmp.ne.s32.totalorder %v408, 0
    %vm455 = vcmp.ne.s32.totalorder %v415, 0
    %vm456 = vcmp.ne.s32.totalorder %v422, 0
    %vm457 = vcmp.ne.s32.totalorder %v429, 0
    %vm458 = vcmp.ne.s32.totalorder %v436, 0
    %vm459 = vcmp.ne.s32.totalorder %v443, 0
    %vm460 = vcmp.lt.s32.totalorder %v338, 0
    %vm461 = vcmp.lt.s32.totalorder %v345, 0
    %vm462 = vcmp.lt.s32.totalorder %v352, 0
    %vm463 = vcmp.lt.s32.totalorder %v359, 0
    %vm464 = vcmp.lt.s32.totalorder %v366, 0
    %vm465 = vcmp.lt.s32.totalorder %v373, 0
    %vm466 = vcmp.lt.s32.totalorder %v380, 0
    %vm467 = vcmp.lt.s32.totalorder %v387, 0
    %vm468 = vcmp.lt.s32.totalorder %v394, 0
    %vm469 = vcmp.lt.s32.totalorder %v401, 0
    %vm470 = vcmp.lt.s32.totalorder %v408, 0
    %vm471 = vcmp.lt.s32.totalorder %v415, 0
    %vm472 = vcmp.lt.s32.totalorder %v422, 0
    %vm473 = vcmp.lt.s32.totalorder %v429, 0
    %vm474 = vcmp.lt.s32.totalorder %v436, 0
    %vm475 = vcmp.lt.s32.totalorder %v443, 0
    %vm476 = vmand %vm460, %vm444
    %vm477 = vmand %vm461, %vm445
    %vm478 = vmand %vm462, %vm446
    %vm479 = vmand %vm463, %vm447
    %vm480 = vmand %vm464, %vm448
    %vm481 = vmand %vm465, %vm449
    %vm482 = vmand %vm466, %vm450
    %vm483 = vmand %vm467, %vm451
    %vm484 = vmand %vm468, %vm452
    %vm485 = vmand %vm469, %vm453
    %vm486 = vmand %vm470, %vm454
    %vm487 = vmand %vm471, %vm455
    %vm488 = vmand %vm472, %vm456
    %vm489 = vmand %vm473, %vm457
    %vm490 = vmand %vm474, %vm458
    %vm491 = vmand %vm475, %vm459
    %v492 = vadd.s32 %v338, 16
    %v493 = vadd.s32 %v345, 16
    %v494 = vadd.s32 %v352, 16
    %v495 = vadd.s32 %v359, 16
    %v496 = vadd.s32 %v366, 16
    %v497 = vadd.s32 %v373, 16
    %v498 = vadd.s32 %v380, 16
    %v499 = vadd.s32 %v387, 16
    %v500 = vadd.s32 %v394, 16
    %v501 = vadd.s32 %v401, 16
    %v502 = vadd.s32 %v408, 16
    %v503 = vadd.s32 %v415, 16
    %v504 = vadd.s32 %v422, 16
    %v505 = vadd.s32 %v429, 16
    %v506 = vadd.s32 %v436, 16
    %v507 = vadd.s32 %v443, 16
    %v508 = vsel %vm476, %v492, %v338
    %v509 = vsel %vm477, %v493, %v345
    %v510 = vsel %vm478, %v494, %v352
    %v511 = vsel %vm479, %v495, %v359
    %v512 = vsel %vm480, %v496, %v366
    %v513 = vsel %vm481, %v497, %v373
    %v514 = vsel %vm482, %v498, %v380
    %v515 = vsel %vm483, %v499, %v387
    %v516 = vsel %vm484, %v500, %v394
    %v517 = vsel %vm485, %v501, %v401
    %v518 = vsel %vm486, %v502, %v408
    %v519 = vsel %vm487, %v503, %v415
    %v520 = vsel %vm488, %v504, %v422
    %v521 = vsel %vm489, %v505, %v429
    %v522 = vsel %vm490, %v506, %v436
    %v523 = vsel %vm491, %v507, %v443
    %vm524 = vcmp.ne.s32.totalorder %v508, 0
    %vm525 = vcmp.ne.s32.totalorder %v509, 0
    %vm526 = vcmp.ne.s32.totalorder %v510, 0
    %vm527 = vcmp.ne.s32.totalorder %v511, 0
    %vm528 = vcmp.ne.s32.totalorder %v512, 0
    %vm529 = vcmp.ne.s32.totalorder %v513, 0
    %vm530 = vcmp.ne.s32.totalorder %v514, 0
    %vm531 = vcmp.ne.s32.totalorder %v515, 0
    %vm532 = vcmp.ne.s32.totalorder %v516, 0
    %vm533 = vcmp.ne.s32.totalorder %v517, 0
    %vm534 = vcmp.ne.s32.totalorder %v518, 0
    %vm535 = vcmp.ne.s32.totalorder %v519, 0
    %vm536 = vcmp.ne.s32.totalorder %v520, 0
    %vm537 = vcmp.ne.s32.totalorder %v521, 0
    %vm538 = vcmp.ne.s32.totalorder %v522, 0
    %vm539 = vcmp.ne.s32.totalorder %v523, 0
    %vm540 = vcmp.ne.s32.totalorder %v508, 15
    %vm541 = vcmp.ne.s32.totalorder %v509, 15
    %vm542 = vcmp.ne.s32.totalorder %v510, 15
    %vm543 = vcmp.ne.s32.totalorder %v511, 15
    %vm544 = vcmp.ne.s32.totalorder %v512, 15
    %vm545 = vcmp.ne.s32.totalorder %v513, 15
    %vm546 = vcmp.ne.s32.totalorder %v514, 15
    %vm547 = vcmp.ne.s32.totalorder %v515, 15
    %vm548 = vcmp.ne.s32.totalorder %v516, 15
    %vm549 = vcmp.ne.s32.totalorder %v517, 15
    %vm550 = vcmp.ne.s32.totalorder %v518, 15
    %vm551 = vcmp.ne.s32.totalorder %v519, 15
    %vm552 = vcmp.ne.s32.totalorder %v520, 15
    %vm553 = vcmp.ne.s32.totalorder %v521, 15
    %vm554 = vcmp.ne.s32.totalorder %v522, 15
    %vm555 = vcmp.ne.s32.totalorder %v523, 15
    %v556 = vrot.slane %v299, 7
    %v557 = vrot.slane %v300, 7
    %v558 = vrot.slane %v301, 7
    %v559 = vrot.slane %v302, 7
    %v560 = vrot.slane %v303, 7
    %v561 = vrot.slane %v304, 7
    %v562 = vrot.slane %v305, 7
    %v563 = vrot.slane %v306, 7
    %v564 = vrot.slane %v307, 7
    %v565 = vrot.slane %v308, 7
    %v566 = vrot.slane %v309, 7
    %v567 = vrot.slane %v310, 7
    %v568 = vrot.slane %v311, 7
    %v569 = vrot.slane %v312, 7
    %v570 = vrot.slane %v313, 7
    %v571 = vrot.slane %v314, 7
    %vm572 = vcmp.lt.s32.totalorder %v316, 1
    %v573 = vsel %vm572, %v570, %v571
    %v574 = vsel %vm572, %v569, %v570
    %v575 = vsel %vm572, %v568, %v569
    %v576 = vsel %vm572, %v567, %v568
    %v577 = vsel %vm572, %v566, %v567
    %v578 = vsel %vm572, %v565, %v566
    %v579 = vsel %vm572, %v564, %v565
    %v580 = vsel %vm572, %v563, %v564
    %v581 = vsel %vm572, %v562, %v563
    %v582 = vsel %vm572, %v561, %v562
    %v583 = vsel %vm572, %v560, %v561
    %v584 = vsel %vm572, %v559, %v560
    %v585 = vsel %vm572, %v558, %v559
    %v586 = vsel %vm572, %v557, %v558
    %v587 = vsel %vm572, %v556, %v557
    %v588 = vsel %vm572, %v571, %v556
    %v589 = vsel %vm524, 1, 0
    %v590 = vsel %vm525, 1, 0
    %v591 = vsel %vm526, 1, 0
    %v592 = vsel %vm527, 1, 0
    %v593 = vsel %vm528, 1, 0
    %v594 = vsel %vm529, 1, 0
    %v595 = vsel %vm530, 1, 0
    %v596 = vsel %vm531, 1, 0
    %v597 = vsel %vm532, 1, 0
    %v598 = vsel %vm533, 1, 0
    %v599 = vsel %vm534, 1, 0
    %v600 = vsel %vm535, 1, 0
    %v601 = vsel %vm536, 1, 0
    %v602 = vsel %vm537, 1, 0
    %v603 = vsel %vm538, 1, 0
    %v604 = vsel %vm539, 1, 0
    %vm605 = vcmp.eq.s32.totalorder %v589, 1
    %vm606 = vcmp.eq.s32.totalorder %v590, 1
    %vm607 = vcmp.eq.s32.totalorder %v591, 1
    %vm608 = vcmp.eq.s32.totalorder %v592, 1
    %vm609 = vcmp.eq.s32.totalorder %v593, 1
    %vm610 = vcmp.eq.s32.totalorder %v594, 1
    %vm611 = vcmp.eq.s32.totalorder %v595, 1
    %vm612 = vcmp.eq.s32.totalorder %v596, 1
    %vm613 = vcmp.eq.s32.totalorder %v597, 1
    %vm614 = vcmp.eq.s32.totalorder %v598, 1
    %vm615 = vcmp.eq.s32.totalorder %v599, 1
    %vm616 = vcmp.eq.s32.totalorder %v600, 1
    %vm617 = vcmp.eq.s32.totalorder %v601, 1
    %vm618 = vcmp.eq.s32.totalorder %v602, 1
    %vm619 = vcmp.eq.s32.totalorder %v603, 1
    %vm620 = vcmp.eq.s32.totalorder %v604, 1
    %v621 = vsel %vm605, %v588, 0.0
    %v622 = vsel %vm606, %v587, 0.0
    %v623 = vsel %vm607, %v586, 0.0
    %v624 = vsel %vm608, %v585, 0.0
    %v625 = vsel %vm609, %v584, 0.0
    %v626 = vsel %vm610, %v583, 0.0
    %v627 = vsel %vm611, %v582, 0.0
    %v628 = vsel %vm612, %v581, 0.0
    %v629 = vsel %vm613, %v580, 0.0
    %v630 = vsel %vm614, %v579, 0.0
    %v631 = vsel %vm615, %v578, 0.0
    %v632 = vsel %vm616, %v577, 0.0
    %v633 = vsel %vm617, %v576, 0.0
    %v634 = vsel %vm618, %v575, 0.0
    %v635 = vsel %vm619, %v574, 0.0
    %v636 = vsel %vm620, %v573, 0.0
    %v637 = vrot.slane %v299, 1
    %v638 = vrot.slane %v300, 1
    %v639 = vrot.slane %v301, 1
    %v640 = vrot.slane %v302, 1
    %v641 = vrot.slane %v303, 1
    %v642 = vrot.slane %v304, 1
    %v643 = vrot.slane %v305, 1
    %v644 = vrot.slane %v306, 1
    %v645 = vrot.slane %v307, 1
    %v646 = vrot.slane %v308, 1
    %v647 = vrot.slane %v309, 1
    %v648 = vrot.slane %v310, 1
    %v649 = vrot.slane %v311, 1
    %v650 = vrot.slane %v312, 1
    %v651 = vrot.slane %v313, 1
    %v652 = vrot.slane %v314, 1
    %vm653 = vcmp.lt.s32.totalorder %v316, 7
    %v654 = vsel %vm653, %v651, %v652
    %v655 = vsel %vm653, %v650, %v651
    %v656 = vsel %vm653, %v649, %v650
    %v657 = vsel %vm653, %v648, %v649
    %v658 = vsel %vm653, %v647, %v648
    %v659 = vsel %vm653, %v646, %v647
    %v660 = vsel %vm653, %v645, %v646
    %v661 = vsel %vm653, %v644, %v645
    %v662 = vsel %vm653, %v643, %v644
    %v663 = vsel %vm653, %v642, %v643
    %v664 = vsel %vm653, %v641, %v642
    %v665 = vsel %vm653, %v640, %v641
    %v666 = vsel %vm653, %v639, %v640
    %v667 = vsel %vm653, %v638, %v639
    %v668 = vsel %vm653, %v637, %v638
    %v669 = vsel %vm653, %v652, %v637
    %v670 = vsel %vm540, 1, 0
    %v671 = vsel %vm541, 1, 0
    %v672 = vsel %vm542, 1, 0
    %v673 = vsel %vm543, 1, 0
    %v674 = vsel %vm544, 1, 0
    %v675 = vsel %vm545, 1, 0
    %v676 = vsel %vm546, 1, 0
    %v677 = vsel %vm547, 1, 0
    %v678 = vsel %vm548, 1, 0
    %v679 = vsel %vm549, 1, 0
    %v680 = vsel %vm550, 1, 0
    %v681 = vsel %vm551, 1, 0
    %v682 = vsel %vm552, 1, 0
    %v683 = vsel %vm553, 1, 0
    %v684 = vsel %vm554, 1, 0
    %v685 = vsel %vm555, 1, 0
    %vm686 = vcmp.eq.s32.totalorder %v670, 1
    %vm687 = vcmp.eq.s32.totalorder %v671, 1
    %vm688 = vcmp.eq.s32.totalorder %v672, 1
    %vm689 = vcmp.eq.s32.totalorder %v673, 1
    %vm690 = vcmp.eq.s32.totalorder %v674, 1
    %vm691 = vcmp.eq.s32.totalorder %v675, 1
    %vm692 = vcmp.eq.s32.totalorder %v676, 1
    %vm693 = vcmp.eq.s32.totalorder %v677, 1
    %vm694 = vcmp.eq.s32.totalorder %v678, 1
    %vm695 = vcmp.eq.s32.totalorder %v679, 1
    %vm696 = vcmp.eq.s32.totalorder %v680, 1
    %vm697 = vcmp.eq.s32.totalorder %v681, 1
    %vm698 = vcmp.eq.s32.totalorder %v682, 1
    %vm699 = vcmp.eq.s32.totalorder %v683, 1
    %vm700 = vcmp.eq.s32.totalorder %v684, 1
    %vm701 = vcmp.eq.s32.totalorder %v685, 1
    %v702 = vsel %vm686, %v668, 0.0
    %v703 = vsel %vm687, %v667, 0.0
    %v704 = vsel %vm688, %v666, 0.0
    %v705 = vsel %vm689, %v665, 0.0
    %v706 = vsel %vm690, %v664, 0.0
    %v707 = vsel %vm691, %v663, 0.0
    %v708 = vsel %vm692, %v662, 0.0
    %v709 = vsel %vm693, %v661, 0.0
    %v710 = vsel %vm694, %v660, 0.0
    %v711 = vsel %vm695, %v659, 0.0
    %v712 = vsel %vm696, %v658, 0.0
    %v713 = vsel %vm697, %v657, 0.0
    %v714 = vsel %vm698, %v656, 0.0
    %v715 = vsel %vm699, %v655, 0.0
    %v716 = vsel %vm700, %v654, 0.0
    %v717 = vsel %vm701, %v669, 0.0
    %v718 = vpack.c.bf16 %v622, %v621
    %v719 = vpack.c.bf16 %v624, %v623
    %v720 = vpack.c.bf16 %v626, %v625
    %v721 = vpack.c.bf16 %v628, %v627
    %v722 = vpack.c.bf16 %v630, %v629
    %v723 = vpack.c.bf16 %v632, %v631
    %v724 = vpack.c.bf16 %v634, %v633
    %v725 = vpack.c.bf16 %v636, %v635
    %v726 = vld [vmem:[#allocation8] sm:$0xf]
    %v727 = vld [vmem:[#allocation8 + $0x4] sm:$0xf]
    %v728 = vld [vmem:[#allocation8 + $0x8] sm:$0xf]
    %v729 = vld [vmem:[#allocation8 + $0xc] sm:$0xf]
    %v730 = vld [vmem:[#allocation8 + $0x10] sm:$0xf]
    %v731 = vld [vmem:[#allocation8 + $0x14] sm:$0xf]
    %v732 = vld [vmem:[#allocation8 + $0x18] sm:$0xf]
    %v733 = vld [vmem:[#allocation8 + $0x1c] sm:$0xf]
    %v734 = vpack.c.bf16 %v300, %v299
    %v735 = vpack.c.bf16 %v302, %v301
    %v736 = vpack.c.bf16 %v304, %v303
    %v737 = vpack.c.bf16 %v306, %v305
    %v738 = vpack.c.bf16 %v308, %v307
    %v739 = vpack.c.bf16 %v310, %v309
    %v740 = vpack.c.bf16 %v312, %v311
    %v741 = vpack.c.bf16 %v314, %v313
    %s742 = scalar_lea.vmem [#allocation8], 32
    %v743 = vld [vmem:[%s742] sm:$0xf]
    %v744 = vld [vmem:[%s742 + $0x4] sm:$0xf]
    %v745 = vld [vmem:[%s742 + $0x8] sm:$0xf]
    %v746 = vld [vmem:[%s742 + $0xc] sm:$0xf]
    %v747 = vld [vmem:[%s742 + $0x10] sm:$0xf]
    %v748 = vld [vmem:[%s742 + $0x14] sm:$0xf]
    %v749 = vld [vmem:[%s742 + $0x18] sm:$0xf]
    %v750 = vld [vmem:[%s742 + $0x1c] sm:$0xf]
    %v759 = vunpack.c.l.b16 %v743
    %v760 = vunpack.c.l.b16 %v744
    %v761 = vunpack.c.l.b16 %v745
    %v762 = vunpack.c.l.b16 %v746
    %v763 = vunpack.c.l.b16 %v747
    %v764 = vunpack.c.l.b16 %v748
    %v765 = vunpack.c.l.b16 %v749
    %v766 = vunpack.c.l.b16 %v750
    %v767 = vpack.c.b16 %v760, %v759
    %v768 = vpack.c.b16 %v762, %v761
    %v769 = vpack.c.b16 %v764, %v763
    %v770 = vpack.c.b16 %v766, %v765
    %vm775 = vcmask 523264
    %v777 = vsel %vm775, %v734, 0
    %v780 = vsel %vm775, %v735, 0
    %v783 = vsel %vm775, %v736, 0
    %v786 = vsel %vm775, %v737, 0
    %v789 = vsel %vm775, %v738, 0
    %v792 = vsel %vm775, %v739, 0
    %v795 = vsel %vm775, %v740, 0
    %v798 = vsel %vm775, %v741, 0
    %800 = vmatpush.bf16.msra.mxu0 0
    %801 = vmatpush.bf16.msra.mxu0 0
    %802 = vmatpush.bf16.msra.mxu0 0
    %803 = vmatpush.bf16.msra.mxu0 0
    %804 = vmatpush.bf16.msra.mxu0 %v770
    %805 = vmatpush.bf16.msra.mxu0 %v769
    %806 = vmatpush.bf16.msra.mxu0 %v768
    %807 = vmatpush.bf16.msra.mxu0 %v767
    %808 = vmatmul.bf16.gmra.mxu0 %v777
    %v809 = vpop.f32.mrf.mxu0
    %v810 = vadd.f32 0.0, %v809
    %v811 = vpop.f32.mrf.mxu0
    %v812 = vadd.f32 0.0, %v811
    %813 = vmatmul.bf16.gmra.mxu0 %v780
    %v814 = vpop.f32.mrf.mxu0
    %v815 = vadd.f32 0.0, %v814
    %v816 = vpop.f32.mrf.mxu0
    %v817 = vadd.f32 0.0, %v816
    %818 = vmatmul.bf16.gmra.mxu0 %v783
    %v819 = vpop.f32.mrf.mxu0
    %v820 = vadd.f32 0.0, %v819
    %v821 = vpop.f32.mrf.mxu0
    %v822 = vadd.f32 0.0, %v821
    %823 = vmatmul.bf16.gmra.mxu0 %v786
    %v824 = vpop.f32.mrf.mxu0
    %v825 = vadd.f32 0.0, %v824
    %v826 = vpop.f32.mrf.mxu0
    %v827 = vadd.f32 0.0, %v826
    %828 = vmatmul.bf16.gmra.mxu0 %v789
    %v829 = vpop.f32.mrf.mxu0
    %v830 = vadd.f32 0.0, %v829
    %v831 = vpop.f32.mrf.mxu0
    %v832 = vadd.f32 0.0, %v831
    %833 = vmatmul.bf16.gmra.mxu0 %v792
    %v834 = vpop.f32.mrf.mxu0
    %v835 = vadd.f32 0.0, %v834
    %v836 = vpop.f32.mrf.mxu0
    %v837 = vadd.f32 0.0, %v836
    %838 = vmatmul.bf16.gmra.mxu0 %v795
    %v839 = vpop.f32.mrf.mxu0
    %v840 = vadd.f32 0.0, %v839
    %v841 = vpop.f32.mrf.mxu0
    %v842 = vadd.f32 0.0, %v841
    %843 = vmatmul.bf16.gmra.mxu0 %v798
    %v844 = vpop.f32.mrf.mxu0
    %v845 = vadd.f32 0.0, %v844
    %v846 = vpop.f32.mrf.mxu0
    %v847 = vadd.f32 0.0, %v846
    %848 = vdwg.mxu0
    %v857 = vunpack.c.l.b16 %v726
    %v858 = vunpack.c.l.b16 %v727
    %v859 = vunpack.c.l.b16 %v728
    %v860 = vunpack.c.l.b16 %v729
    %v861 = vunpack.c.l.b16 %v730
    %v862 = vunpack.c.l.b16 %v731
    %v863 = vunpack.c.l.b16 %v732
    %v864 = vunpack.c.l.b16 %v733
    %v865 = vpack.c.b16 %v858, %v857
    %v866 = vpack.c.b16 %v860, %v859
    %v867 = vpack.c.b16 %v862, %v861
    %v868 = vpack.c.b16 %v864, %v863
    %v874 = vsel %vm775, %v718, 0
    %v877 = vsel %vm775, %v719, 0
    %v880 = vsel %vm775, %v720, 0
    %v883 = vsel %vm775, %v721, 0
    %v886 = vsel %vm775, %v722, 0
    %v889 = vsel %vm775, %v723, 0
    %v892 = vsel %vm775, %v724, 0
    %v895 = vsel %vm775, %v725, 0
    %897 = vmatpush.bf16.msra.mxu0 0
    %898 = vmatpush.bf16.msra.mxu0 0
    %899 = vmatpush.bf16.msra.mxu0 0
    %900 = vmatpush.bf16.msra.mxu0 0
    %901 = vmatpush.bf16.msra.mxu0 %v868
    %902 = vmatpush.bf16.msra.mxu0 %v867
    %903 = vmatpush.bf16.msra.mxu0 %v866
    %904 = vmatpush.bf16.msra.mxu0 %v865
    %905 = vmatmul.bf16.gmra.mxu0 %v874
    %v906 = vpop.f32.mrf.mxu0
    %v907 = vadd.f32 %v810, %v906
    %v908 = vpop.f32.mrf.mxu0
    %v909 = vadd.f32 %v812, %v908
    %910 = vmatmul.bf16.gmra.mxu0 %v877
    %v911 = vpop.f32.mrf.mxu0
    %v912 = vadd.f32 %v815, %v911
    %v913 = vpop.f32.mrf.mxu0
    %v914 = vadd.f32 %v817, %v913
    %915 = vmatmul.bf16.gmra.mxu0 %v880
    %v916 = vpop.f32.mrf.mxu0
    %v917 = vadd.f32 %v820, %v916
    %v918 = vpop.f32.mrf.mxu0
    %v919 = vadd.f32 %v822, %v918
    %920 = vmatmul.bf16.gmra.mxu0 %v883
    %v921 = vpop.f32.mrf.mxu0
    %v922 = vadd.f32 %v825, %v921
    %v923 = vpop.f32.mrf.mxu0
    %v924 = vadd.f32 %v827, %v923
    %925 = vmatmul.bf16.gmra.mxu0 %v886
    %v926 = vpop.f32.mrf.mxu0
    %v927 = vadd.f32 %v830, %v926
    %v928 = vpop.f32.mrf.mxu0
    %v929 = vadd.f32 %v832, %v928
    %930 = vmatmul.bf16.gmra.mxu0 %v889
    %v931 = vpop.f32.mrf.mxu0
    %v932 = vadd.f32 %v835, %v931
    %v933 = vpop.f32.mrf.mxu0
    %v934 = vadd.f32 %v837, %v933
    %935 = vmatmul.bf16.gmra.mxu0 %v892
    %v936 = vpop.f32.mrf.mxu0
    %v937 = vadd.f32 %v840, %v936
    %v938 = vpop.f32.mrf.mxu0
    %v939 = vadd.f32 %v842, %v938
    %940 = vmatmul.bf16.gmra.mxu0 %v895
    %v941 = vpop.f32.mrf.mxu0
    %v942 = vadd.f32 %v845, %v941
    %v943 = vpop.f32.mrf.mxu0
    %v944 = vadd.f32 %v847, %v943
    %945 = vdwg.mxu0
    %v946 = vpack.c.bf16 %v703, %v702
    %v947 = vpack.c.bf16 %v705, %v704
    %v948 = vpack.c.bf16 %v707, %v706
    %v949 = vpack.c.bf16 %v709, %v708
    %v950 = vpack.c.bf16 %v711, %v710
    %v951 = vpack.c.bf16 %v713, %v712
    %v952 = vpack.c.bf16 %v715, %v714
    %v953 = vpack.c.bf16 %v717, %v716
    %s954 = scalar_lea.vmem [#allocation8], 64
    %v955 = vld [vmem:[%s954] sm:$0xf]
    %v956 = vld [vmem:[%s954 + $0x4] sm:$0xf]
    %v957 = vld [vmem:[%s954 + $0x8] sm:$0xf]
    %v958 = vld [vmem:[%s954 + $0xc] sm:$0xf]
    %v959 = vld [vmem:[%s954 + $0x10] sm:$0xf]
    %v960 = vld [vmem:[%s954 + $0x14] sm:$0xf]
    %v961 = vld [vmem:[%s954 + $0x18] sm:$0xf]
    %v962 = vld [vmem:[%s954 + $0x1c] sm:$0xf]
    %v971 = vunpack.c.l.b16 %v955
    %v972 = vunpack.c.l.b16 %v956
    %v973 = vunpack.c.l.b16 %v957
    %v974 = vunpack.c.l.b16 %v958
    %v975 = vunpack.c.l.b16 %v959
    %v976 = vunpack.c.l.b16 %v960
    %v977 = vunpack.c.l.b16 %v961
    %v978 = vunpack.c.l.b16 %v962
    %v979 = vpack.c.b16 %v972, %v971
    %v980 = vpack.c.b16 %v974, %v973
    %v981 = vpack.c.b16 %v976, %v975
    %v982 = vpack.c.b16 %v978, %v977
    %v988 = vsel %vm775, %v946, 0
    %v991 = vsel %vm775, %v947, 0
    %v994 = vsel %vm775, %v948, 0
    %v997 = vsel %vm775, %v949, 0
    %v1000 = vsel %vm775, %v950, 0
    %v1003 = vsel %vm775, %v951, 0
    %v1006 = vsel %vm775, %v952, 0
    %v1009 = vsel %vm775, %v953, 0
    %1011 = vmatpush.bf16.msra.mxu0 0
    %1012 = vmatpush.bf16.msra.mxu0 0
    %1013 = vmatpush.bf16.msra.mxu0 0
    %1014 = vmatpush.bf16.msra.mxu0 0
    %1015 = vmatpush.bf16.msra.mxu0 %v982
    %1016 = vmatpush.bf16.msra.mxu0 %v981
    %1017 = vmatpush.bf16.msra.mxu0 %v980
    %1018 = vmatpush.bf16.msra.mxu0 %v979
    %1019 = vmatmul.bf16.gmra.mxu0 %v988
    %v1020 = vpop.f32.mrf.mxu0
    %v1021 = vadd.f32 0.0, %v1020
    %v1022 = vpop.f32.mrf.mxu0
    %v1023 = vadd.f32 0.0, %v1022
    %1024 = vmatmul.bf16.gmra.mxu0 %v991
    %v1025 = vpop.f32.mrf.mxu0
    %v1026 = vadd.f32 0.0, %v1025
    %v1027 = vpop.f32.mrf.mxu0
    %v1028 = vadd.f32 0.0, %v1027
    %1029 = vmatmul.bf16.gmra.mxu0 %v994
    %v1030 = vpop.f32.mrf.mxu0
    %v1031 = vadd.f32 0.0, %v1030
    %v1032 = vpop.f32.mrf.mxu0
    %v1033 = vadd.f32 0.0, %v1032
    %1034 = vmatmul.bf16.gmra.mxu0 %v997
    %v1035 = vpop.f32.mrf.mxu0
    %v1036 = vadd.f32 0.0, %v1035
    %v1037 = vpop.f32.mrf.mxu0
    %v1038 = vadd.f32 0.0, %v1037
    %1039 = vmatmul.bf16.gmra.mxu0 %v1000
    %v1040 = vpop.f32.mrf.mxu0
    %v1041 = vadd.f32 0.0, %v1040
    %v1042 = vpop.f32.mrf.mxu0
    %v1043 = vadd.f32 0.0, %v1042
    %1044 = vmatmul.bf16.gmra.mxu0 %v1003
    %v1045 = vpop.f32.mrf.mxu0
    %v1046 = vadd.f32 0.0, %v1045
    %v1047 = vpop.f32.mrf.mxu0
    %v1048 = vadd.f32 0.0, %v1047
    %1049 = vmatmul.bf16.gmra.mxu0 %v1006
    %v1050 = vpop.f32.mrf.mxu0
    %v1051 = vadd.f32 0.0, %v1050
    %v1052 = vpop.f32.mrf.mxu0
    %v1053 = vadd.f32 0.0, %v1052
    %1054 = vmatmul.bf16.gmra.mxu0 %v1009
    %v1055 = vpop.f32.mrf.mxu0
    %v1056 = vadd.f32 0.0, %v1055
    %v1057 = vpop.f32.mrf.mxu0
    %v1058 = vadd.f32 0.0, %v1057
    %1059 = vdwg.mxu0
    %v1060 = vadd.f32 %v907, %v1021
    %v1061 = vadd.f32 %v909, %v1023
    %v1062 = vadd.f32 %v912, %v1026
    %v1063 = vadd.f32 %v914, %v1028
    %v1064 = vadd.f32 %v917, %v1031
    %v1065 = vadd.f32 %v919, %v1033
    %v1066 = vadd.f32 %v922, %v1036
    %v1067 = vadd.f32 %v924, %v1038
    %v1068 = vadd.f32 %v927, %v1041
    %v1069 = vadd.f32 %v929, %v1043
    %v1070 = vadd.f32 %v932, %v1046
    %v1071 = vadd.f32 %v934, %v1048
    %v1072 = vadd.f32 %v937, %v1051
    %v1073 = vadd.f32 %v939, %v1053
    %v1074 = vadd.f32 %v942, %v1056
    %v1075 = vadd.f32 %v944, %v1058
    %v1076 = vld [vmem:[%s5] sm:$0x1]
    %v1078 = vperm.slane %v1076, 0
    %v1080 = vmul.f32 %v1060, %v1078
    %v1081 = vmul.f32 %v1061, %v1078
    %v1082 = vmul.f32 %v1062, %v1078
    %v1083 = vmul.f32 %v1063, %v1078
    %v1084 = vmul.f32 %v1064, %v1078
    %v1085 = vmul.f32 %v1065, %v1078
    %v1086 = vmul.f32 %v1066, %v1078
    %v1087 = vmul.f32 %v1067, %v1078
    %v1088 = vmul.f32 %v1068, %v1078
    %v1089 = vmul.f32 %v1069, %v1078
    %v1090 = vmul.f32 %v1070, %v1078
    %v1091 = vmul.f32 %v1071, %v1078
    %v1092 = vmul.f32 %v1072, %v1078
    %v1093 = vmul.f32 %v1073, %v1078
    %v1094 = vmul.f32 %v1074, %v1078
    %v1095 = vmul.f32 %v1075, %v1078
    %v1096 = vld [vmem:[%s6] sm:$0x1]
    %v1098 = vperm.slane %v1096, 0
    %v1100 = vadd.f32 %v1080, %v1098
    %v1101 = vadd.f32 %v1081, %v1098
    %v1102 = vadd.f32 %v1082, %v1098
    %v1103 = vadd.f32 %v1083, %v1098
    %v1104 = vadd.f32 %v1084, %v1098
    %v1105 = vadd.f32 %v1085, %v1098
    %v1106 = vadd.f32 %v1086, %v1098
    %v1107 = vadd.f32 %v1087, %v1098
    %v1108 = vadd.f32 %v1088, %v1098
    %v1109 = vadd.f32 %v1089, %v1098
    %v1110 = vadd.f32 %v1090, %v1098
    %v1111 = vadd.f32 %v1091, %v1098
    %v1112 = vadd.f32 %v1092, %v1098
    %v1113 = vadd.f32 %v1093, %v1098
    %v1114 = vadd.f32 %v1094, %v1098
    %v1115 = vadd.f32 %v1095, %v1098
    %v1116 = vmax.f32 %v1100, 0.0
    %v1117 = vmax.f32 %v1101, 0.0
    %v1118 = vmax.f32 %v1102, 0.0
    %v1119 = vmax.f32 %v1103, 0.0
    %v1120 = vmax.f32 %v1104, 0.0
    %v1121 = vmax.f32 %v1105, 0.0
    %v1122 = vmax.f32 %v1106, 0.0
    %v1123 = vmax.f32 %v1107, 0.0
    %v1124 = vmax.f32 %v1108, 0.0
    %v1125 = vmax.f32 %v1109, 0.0
    %v1126 = vmax.f32 %v1110, 0.0
    %v1127 = vmax.f32 %v1111, 0.0
    %v1128 = vmax.f32 %v1112, 0.0
    %v1129 = vmax.f32 %v1113, 0.0
    %v1130 = vmax.f32 %v1114, 0.0
    %v1131 = vmax.f32 %v1115, 0.0
    %v1132 = vrot.slane %v1116, 7
    %v1133 = vrot.slane %v1117, 7
    %v1134 = vrot.slane %v1118, 7
    %v1135 = vrot.slane %v1119, 7
    %v1136 = vrot.slane %v1120, 7
    %v1137 = vrot.slane %v1121, 7
    %v1138 = vrot.slane %v1122, 7
    %v1139 = vrot.slane %v1123, 7
    %v1140 = vrot.slane %v1124, 7
    %v1141 = vrot.slane %v1125, 7
    %v1142 = vrot.slane %v1126, 7
    %v1143 = vrot.slane %v1127, 7
    %v1144 = vrot.slane %v1128, 7
    %v1145 = vrot.slane %v1129, 7
    %v1146 = vrot.slane %v1130, 7
    %v1147 = vrot.slane %v1131, 7
    %v1148 = vsel %vm572, %v1146, %v1147
    %v1149 = vsel %vm572, %v1145, %v1146
    %v1150 = vsel %vm572, %v1144, %v1145
    %v1151 = vsel %vm572, %v1143, %v1144
    %v1152 = vsel %vm572, %v1142, %v1143
    %v1153 = vsel %vm572, %v1141, %v1142
    %v1154 = vsel %vm572, %v1140, %v1141
    %v1155 = vsel %vm572, %v1139, %v1140
    %v1156 = vsel %vm572, %v1138, %v1139
    %v1157 = vsel %vm572, %v1137, %v1138
    %v1158 = vsel %vm572, %v1136, %v1137
    %v1159 = vsel %vm572, %v1135, %v1136
    %v1160 = vsel %vm572, %v1134, %v1135
    %v1161 = vsel %vm572, %v1133, %v1134
    %v1162 = vsel %vm572, %v1132, %v1133
    %v1163 = vsel %vm572, %v1147, %v1132
    %v1164 = vsel %vm605, %v1163, 0.0
    %v1165 = vsel %vm606, %v1162, 0.0
    %v1166 = vsel %vm607, %v1161, 0.0
    %v1167 = vsel %vm608, %v1160, 0.0
    %v1168 = vsel %vm609, %v1159, 0.0
    %v1169 = vsel %vm610, %v1158, 0.0
    %v1170 = vsel %vm611, %v1157, 0.0
    %v1171 = vsel %vm612, %v1156, 0.0
    %v1172 = vsel %vm613, %v1155, 0.0
    %v1173 = vsel %vm614, %v1154, 0.0
    %v1174 = vsel %vm615, %v1153, 0.0
    %v1175 = vsel %vm616, %v1152, 0.0
    %v1176 = vsel %vm617, %v1151, 0.0
    %v1177 = vsel %vm618, %v1150, 0.0
    %v1178 = vsel %vm619, %v1149, 0.0
    %v1179 = vsel %vm620, %v1148, 0.0
    %v1180 = vrot.slane %v1116, 1
    %v1181 = vrot.slane %v1117, 1
    %v1182 = vrot.slane %v1118, 1
    %v1183 = vrot.slane %v1119, 1
    %v1184 = vrot.slane %v1120, 1
    %v1185 = vrot.slane %v1121, 1
    %v1186 = vrot.slane %v1122, 1
    %v1187 = vrot.slane %v1123, 1
    %v1188 = vrot.slane %v1124, 1
    %v1189 = vrot.slane %v1125, 1
    %v1190 = vrot.slane %v1126, 1
    %v1191 = vrot.slane %v1127, 1
    %v1192 = vrot.slane %v1128, 1
    %v1193 = vrot.slane %v1129, 1
    %v1194 = vrot.slane %v1130, 1
    %v1195 = vrot.slane %v1131, 1
    %v1196 = vsel %vm653, %v1194, %v1195
    %v1197 = vsel %vm653, %v1193, %v1194
    %v1198 = vsel %vm653, %v1192, %v1193
    %v1199 = vsel %vm653, %v1191, %v1192
    %v1200 = vsel %vm653, %v1190, %v1191
    %v1201 = vsel %vm653, %v1189, %v1190
    %v1202 = vsel %vm653, %v1188, %v1189
    %v1203 = vsel %vm653, %v1187, %v1188
    %v1204 = vsel %vm653, %v1186, %v1187
    %v1205 = vsel %vm653, %v1185, %v1186
    %v1206 = vsel %vm653, %v1184, %v1185
    %v1207 = vsel %vm653, %v1183, %v1184
    %v1208 = vsel %vm653, %v1182, %v1183
    %v1209 = vsel %vm653, %v1181, %v1182
    %v1210 = vsel %vm653, %v1180, %v1181
    %v1211 = vsel %vm653, %v1195, %v1180
    %v1212 = vsel %vm686, %v1210, 0.0
    %v1213 = vsel %vm687, %v1209, 0.0
    %v1214 = vsel %vm688, %v1208, 0.0
    %v1215 = vsel %vm689, %v1207, 0.0
    %v1216 = vsel %vm690, %v1206, 0.0
    %v1217 = vsel %vm691, %v1205, 0.0
    %v1218 = vsel %vm692, %v1204, 0.0
    %v1219 = vsel %vm693, %v1203, 0.0
    %v1220 = vsel %vm694, %v1202, 0.0
    %v1221 = vsel %vm695, %v1201, 0.0
    %v1222 = vsel %vm696, %v1200, 0.0
    %v1223 = vsel %vm697, %v1199, 0.0
    %v1224 = vsel %vm698, %v1198, 0.0
    %v1225 = vsel %vm699, %v1197, 0.0
    %v1226 = vsel %vm700, %v1196, 0.0
    %v1227 = vsel %vm701, %v1211, 0.0
    %v1228 = vpack.c.bf16 %v1165, %v1164
    %v1229 = vpack.c.bf16 %v1167, %v1166
    %v1230 = vpack.c.bf16 %v1169, %v1168
    %v1231 = vpack.c.bf16 %v1171, %v1170
    %v1232 = vpack.c.bf16 %v1173, %v1172
    %v1233 = vpack.c.bf16 %v1175, %v1174
    %v1234 = vpack.c.bf16 %v1177, %v1176
    %v1235 = vpack.c.bf16 %v1179, %v1178
    %v1236 = vld [vmem:[#allocation9] sm:$0xf]
    %v1237 = vld [vmem:[#allocation9 + $0x4] sm:$0xf]
    %v1238 = vld [vmem:[#allocation9 + $0x8] sm:$0xf]
    %v1239 = vld [vmem:[#allocation9 + $0xc] sm:$0xf]
    %v1240 = vld [vmem:[#allocation9 + $0x10] sm:$0xf]
    %v1241 = vld [vmem:[#allocation9 + $0x14] sm:$0xf]
    %v1242 = vld [vmem:[#allocation9 + $0x18] sm:$0xf]
    %v1243 = vld [vmem:[#allocation9 + $0x1c] sm:$0xf]
    %v1244 = vld [vmem:[#allocation9 + $0x20] sm:$0xf]
    %v1245 = vld [vmem:[#allocation9 + $0x24] sm:$0xf]
    %v1246 = vld [vmem:[#allocation9 + $0x28] sm:$0xf]
    %v1247 = vld [vmem:[#allocation9 + $0x2c] sm:$0xf]
    %v1248 = vld [vmem:[#allocation9 + $0x30] sm:$0xf]
    %v1249 = vld [vmem:[#allocation9 + $0x34] sm:$0xf]
    %v1250 = vld [vmem:[#allocation9 + $0x38] sm:$0xf]
    %v1251 = vld [vmem:[#allocation9 + $0x3c] sm:$0xf]
    %v1252 = vpack.c.bf16 %v1117, %v1116
    %v1253 = vpack.c.bf16 %v1119, %v1118
    %v1254 = vpack.c.bf16 %v1121, %v1120
    %v1255 = vpack.c.bf16 %v1123, %v1122
    %v1256 = vpack.c.bf16 %v1125, %v1124
    %v1257 = vpack.c.bf16 %v1127, %v1126
    %v1258 = vpack.c.bf16 %v1129, %v1128
    %v1259 = vpack.c.bf16 %v1131, %v1130
    %s1260 = scalar_lea.vmem [#allocation9], 64
    %v1261 = vld [vmem:[%s1260] sm:$0xf]
    %v1262 = vld [vmem:[%s1260 + $0x4] sm:$0xf]
    %v1263 = vld [vmem:[%s1260 + $0x8] sm:$0xf]
    %v1264 = vld [vmem:[%s1260 + $0xc] sm:$0xf]
    %v1265 = vld [vmem:[%s1260 + $0x10] sm:$0xf]
    %v1266 = vld [vmem:[%s1260 + $0x14] sm:$0xf]
    %v1267 = vld [vmem:[%s1260 + $0x18] sm:$0xf]
    %v1268 = vld [vmem:[%s1260 + $0x1c] sm:$0xf]
    %v1269 = vld [vmem:[%s1260 + $0x20] sm:$0xf]
    %v1270 = vld [vmem:[%s1260 + $0x24] sm:$0xf]
    %v1271 = vld [vmem:[%s1260 + $0x28] sm:$0xf]
    %v1272 = vld [vmem:[%s1260 + $0x2c] sm:$0xf]
    %v1273 = vld [vmem:[%s1260 + $0x30] sm:$0xf]
    %v1274 = vld [vmem:[%s1260 + $0x34] sm:$0xf]
    %v1275 = vld [vmem:[%s1260 + $0x38] sm:$0xf]
    %v1276 = vld [vmem:[%s1260 + $0x3c] sm:$0xf]
    %v1293 = vunpack.c.l.b16 %v1261
    %v1294 = vunpack.c.l.b16 %v1262
    %v1295 = vunpack.c.l.b16 %v1263
    %v1296 = vunpack.c.l.b16 %v1264
    %v1297 = vunpack.c.l.b16 %v1265
    %v1298 = vunpack.c.l.b16 %v1266
    %v1299 = vunpack.c.l.b16 %v1267
    %v1300 = vunpack.c.l.b16 %v1268
    %v1301 = vunpack.c.l.b16 %v1269
    %v1302 = vunpack.c.l.b16 %v1270
    %v1303 = vunpack.c.l.b16 %v1271
    %v1304 = vunpack.c.l.b16 %v1272
    %v1305 = vunpack.c.l.b16 %v1273
    %v1306 = vunpack.c.l.b16 %v1274
    %v1307 = vunpack.c.l.b16 %v1275
    %v1308 = vunpack.c.l.b16 %v1276
    %v1309 = vpack.c.b16 %v1294, %v1293
    %v1310 = vpack.c.b16 %v1296, %v1295
    %v1311 = vpack.c.b16 %v1298, %v1297
    %v1312 = vpack.c.b16 %v1300, %v1299
    %v1313 = vpack.c.b16 %v1302, %v1301
    %v1314 = vpack.c.b16 %v1304, %v1303
    %v1315 = vpack.c.b16 %v1306, %v1305
    %v1316 = vpack.c.b16 %v1308, %v1307
    %1325 = vmatpush.bf16.msra.mxu0 %v1316
    %1326 = vmatpush.bf16.msra.mxu0 %v1315
    %1327 = vmatpush.bf16.msra.mxu0 %v1314
    %1328 = vmatpush.bf16.msra.mxu0 %v1313
    %1329 = vmatpush.bf16.msra.mxu0 %v1312
    %1330 = vmatpush.bf16.msra.mxu0 %v1311
    %1331 = vmatpush.bf16.msra.mxu0 %v1310
    %1332 = vmatpush.bf16.msra.mxu0 %v1309
    %1333 = vmatmul.bf16.gmra.mxu0 %v1252
    %v1334 = vpop.f32.mrf.mxu0
    %v1335 = vadd.f32 0.0, %v1334
    %v1336 = vpop.f32.mrf.mxu0
    %v1337 = vadd.f32 0.0, %v1336
    %1338 = vmatmul.bf16.gmra.mxu0 %v1253
    %v1339 = vpop.f32.mrf.mxu0
    %v1340 = vadd.f32 0.0, %v1339
    %v1341 = vpop.f32.mrf.mxu0
    %v1342 = vadd.f32 0.0, %v1341
    %1343 = vmatmul.bf16.gmra.mxu0 %v1254
    %v1344 = vpop.f32.mrf.mxu0
    %v1345 = vadd.f32 0.0, %v1344
    %v1346 = vpop.f32.mrf.mxu0
    %v1347 = vadd.f32 0.0, %v1346
    %1348 = vmatmul.bf16.gmra.mxu0 %v1255
    %v1349 = vpop.f32.mrf.mxu0
    %v1350 = vadd.f32 0.0, %v1349
    %v1351 = vpop.f32.mrf.mxu0
    %v1352 = vadd.f32 0.0, %v1351
    %1353 = vmatmul.bf16.gmra.mxu0 %v1256
    %v1354 = vpop.f32.mrf.mxu0
    %v1355 = vadd.f32 0.0, %v1354
    %v1356 = vpop.f32.mrf.mxu0
    %v1357 = vadd.f32 0.0, %v1356
    %1358 = vmatmul.bf16.gmra.mxu0 %v1257
    %v1359 = vpop.f32.mrf.mxu0
    %v1360 = vadd.f32 0.0, %v1359
    %v1361 = vpop.f32.mrf.mxu0
    %v1362 = vadd.f32 0.0, %v1361
    %1363 = vmatmul.bf16.gmra.mxu0 %v1258
    %v1364 = vpop.f32.mrf.mxu0
    %v1365 = vadd.f32 0.0, %v1364
    %v1366 = vpop.f32.mrf.mxu0
    %v1367 = vadd.f32 0.0, %v1366
    %1368 = vmatmul.bf16.gmra.mxu0 %v1259
    %v1369 = vpop.f32.mrf.mxu0
    %v1370 = vadd.f32 0.0, %v1369
    %v1371 = vpop.f32.mrf.mxu0
    %v1372 = vadd.f32 0.0, %v1371
    %1373 = vdwg.mxu0
    %v1390 = vunpack.c.l.b16 %v1236
    %v1391 = vunpack.c.l.b16 %v1237
    %v1392 = vunpack.c.l.b16 %v1238
    %v1393 = vunpack.c.l.b16 %v1239
    %v1394 = vunpack.c.l.b16 %v1240
    %v1395 = vunpack.c.l.b16 %v1241
    %v1396 = vunpack.c.l.b16 %v1242
    %v1397 = vunpack.c.l.b16 %v1243
    %v1398 = vunpack.c.l.b16 %v1244
    %v1399 = vunpack.c.l.b16 %v1245
    %v1400 = vunpack.c.l.b16 %v1246
    %v1401 = vunpack.c.l.b16 %v1247
    %v1402 = vunpack.c.l.b16 %v1248
    %v1403 = vunpack.c.l.b16 %v1249
    %v1404 = vunpack.c.l.b16 %v1250
    %v1405 = vunpack.c.l.b16 %v1251
    %v1406 = vpack.c.b16 %v1391, %v1390
    %v1407 = vpack.c.b16 %v1393, %v1392
    %v1408 = vpack.c.b16 %v1395, %v1394
    %v1409 = vpack.c.b16 %v1397, %v1396
    %v1410 = vpack.c.b16 %v1399, %v1398
    %v1411 = vpack.c.b16 %v1401, %v1400
    %v1412 = vpack.c.b16 %v1403, %v1402
    %v1413 = vpack.c.b16 %v1405, %v1404
    %1422 = vmatpush.bf16.msra.mxu0 %v1413
    %1423 = vmatpush.bf16.msra.mxu0 %v1412
    %1424 = vmatpush.bf16.msra.mxu0 %v1411
    %1425 = vmatpush.bf16.msra.mxu0 %v1410
    %1426 = vmatpush.bf16.msra.mxu0 %v1409
    %1427 = vmatpush.bf16.msra.mxu0 %v1408
    %1428 = vmatpush.bf16.msra.mxu0 %v1407
    %1429 = vmatpush.bf16.msra.mxu0 %v1406
    %1430 = vmatmul.bf16.gmra.mxu0 %v1228
    %v1431 = vpop.f32.mrf.mxu0
    %v1432 = vadd.f32 %v1335, %v1431
    %v1433 = vpop.f32.mrf.mxu0
    %v1434 = vadd.f32 %v1337, %v1433
    %1435 = vmatmul.bf16.gmra.mxu0 %v1229
    %v1436 = vpop.f32.mrf.mxu0
    %v1437 = vadd.f32 %v1340, %v1436
    %v1438 = vpop.f32.mrf.mxu0
    %v1439 = vadd.f32 %v1342, %v1438
    %1440 = vmatmul.bf16.gmra.mxu0 %v1230
    %v1441 = vpop.f32.mrf.mxu0
    %v1442 = vadd.f32 %v1345, %v1441
    %v1443 = vpop.f32.mrf.mxu0
    %v1444 = vadd.f32 %v1347, %v1443
    %1445 = vmatmul.bf16.gmra.mxu0 %v1231
    %v1446 = vpop.f32.mrf.mxu0
    %v1447 = vadd.f32 %v1350, %v1446
    %v1448 = vpop.f32.mrf.mxu0
    %v1449 = vadd.f32 %v1352, %v1448
    %1450 = vmatmul.bf16.gmra.mxu0 %v1232
    %v1451 = vpop.f32.mrf.mxu0
    %v1452 = vadd.f32 %v1355, %v1451
    %v1453 = vpop.f32.mrf.mxu0
    %v1454 = vadd.f32 %v1357, %v1453
    %1455 = vmatmul.bf16.gmra.mxu0 %v1233
    %v1456 = vpop.f32.mrf.mxu0
    %v1457 = vadd.f32 %v1360, %v1456
    %v1458 = vpop.f32.mrf.mxu0
    %v1459 = vadd.f32 %v1362, %v1458
    %1460 = vmatmul.bf16.gmra.mxu0 %v1234
    %v1461 = vpop.f32.mrf.mxu0
    %v1462 = vadd.f32 %v1365, %v1461
    %v1463 = vpop.f32.mrf.mxu0
    %v1464 = vadd.f32 %v1367, %v1463
    %1465 = vmatmul.bf16.gmra.mxu0 %v1235
    %v1466 = vpop.f32.mrf.mxu0
    %v1467 = vadd.f32 %v1370, %v1466
    %v1468 = vpop.f32.mrf.mxu0
    %v1469 = vadd.f32 %v1372, %v1468
    %1470 = vdwg.mxu0
    %v1471 = vpack.c.bf16 %v1213, %v1212
    %v1472 = vpack.c.bf16 %v1215, %v1214
    %v1473 = vpack.c.bf16 %v1217, %v1216
    %v1474 = vpack.c.bf16 %v1219, %v1218
    %v1475 = vpack.c.bf16 %v1221, %v1220
    %v1476 = vpack.c.bf16 %v1223, %v1222
    %v1477 = vpack.c.bf16 %v1225, %v1224
    %v1478 = vpack.c.bf16 %v1227, %v1226
    %s1479 = scalar_lea.vmem [#allocation9], 128
    %v1480 = vld [vmem:[%s1479] sm:$0xf]
    %v1481 = vld [vmem:[%s1479 + $0x4] sm:$0xf]
    %v1482 = vld [vmem:[%s1479 + $0x8] sm:$0xf]
    %v1483 = vld [vmem:[%s1479 + $0xc] sm:$0xf]
    %v1484 = vld [vmem:[%s1479 + $0x10] sm:$0xf]
    %v1485 = vld [vmem:[%s1479 + $0x14] sm:$0xf]
    %v1486 = vld [vmem:[%s1479 + $0x18] sm:$0xf]
    %v1487 = vld [vmem:[%s1479 + $0x1c] sm:$0xf]
    %v1488 = vld [vmem:[%s1479 + $0x20] sm:$0xf]
    %v1489 = vld [vmem:[%s1479 + $0x24] sm:$0xf]
    %v1490 = vld [vmem:[%s1479 + $0x28] sm:$0xf]
    %v1491 = vld [vmem:[%s1479 + $0x2c] sm:$0xf]
    %v1492 = vld [vmem:[%s1479 + $0x30] sm:$0xf]
    %v1493 = vld [vmem:[%s1479 + $0x34] sm:$0xf]
    %v1494 = vld [vmem:[%s1479 + $0x38] sm:$0xf]
    %v1495 = vld [vmem:[%s1479 + $0x3c] sm:$0xf]
    %v1512 = vunpack.c.l.b16 %v1480
    %v1513 = vunpack.c.l.b16 %v1481
    %v1514 = vunpack.c.l.b16 %v1482
    %v1515 = vunpack.c.l.b16 %v1483
    %v1516 = vunpack.c.l.b16 %v1484
    %v1517 = vunpack.c.l.b16 %v1485
    %v1518 = vunpack.c.l.b16 %v1486
    %v1519 = vunpack.c.l.b16 %v1487
    %v1520 = vunpack.c.l.b16 %v1488
    %v1521 = vunpack.c.l.b16 %v1489
    %v1522 = vunpack.c.l.b16 %v1490
    %v1523 = vunpack.c.l.b16 %v1491
    %v1524 = vunpack.c.l.b16 %v1492
    %v1525 = vunpack.c.l.b16 %v1493
    %v1526 = vunpack.c.l.b16 %v1494
    %v1527 = vunpack.c.l.b16 %v1495
    %v1528 = vpack.c.b16 %v1513, %v1512
    %v1529 = vpack.c.b16 %v1515, %v1514
    %v1530 = vpack.c.b16 %v1517, %v1516
    %v1531 = vpack.c.b16 %v1519, %v1518
    %v1532 = vpack.c.b16 %v1521, %v1520
    %v1533 = vpack.c.b16 %v1523, %v1522
    %v1534 = vpack.c.b16 %v1525, %v1524
    %v1535 = vpack.c.b16 %v1527, %v1526
    %1544 = vmatpush.bf16.msra.mxu0 %v1535
    %1545 = vmatpush.bf16.msra.mxu0 %v1534
    %1546 = vmatpush.bf16.msra.mxu0 %v1533
    %1547 = vmatpush.bf16.msra.mxu0 %v1532
    %1548 = vmatpush.bf16.msra.mxu0 %v1531
    %1549 = vmatpush.bf16.msra.mxu0 %v1530
    %1550 = vmatpush.bf16.msra.mxu0 %v1529
    %1551 = vmatpush.bf16.msra.mxu0 %v1528
    %1552 = vmatmul.bf16.gmra.mxu0 %v1471
    %v1553 = vpop.f32.mrf.mxu0
    %v1554 = vadd.f32 0.0, %v1553
    %v1555 = vpop.f32.mrf.mxu0
    %v1556 = vadd.f32 0.0, %v1555
    %1557 = vmatmul.bf16.gmra.mxu0 %v1472
    %v1558 = vpop.f32.mrf.mxu0
    %v1559 = vadd.f32 0.0, %v1558
    %v1560 = vpop.f32.mrf.mxu0
    %v1561 = vadd.f32 0.0, %v1560
    %1562 = vmatmul.bf16.gmra.mxu0 %v1473
    %v1563 = vpop.f32.mrf.mxu0
    %v1564 = vadd.f32 0.0, %v1563
    %v1565 = vpop.f32.mrf.mxu0
    %v1566 = vadd.f32 0.0, %v1565
    %1567 = vmatmul.bf16.gmra.mxu0 %v1474
    %v1568 = vpop.f32.mrf.mxu0
    %v1569 = vadd.f32 0.0, %v1568
    %v1570 = vpop.f32.mrf.mxu0
    %v1571 = vadd.f32 0.0, %v1570
    %1572 = vmatmul.bf16.gmra.mxu0 %v1475
    %v1573 = vpop.f32.mrf.mxu0
    %v1574 = vadd.f32 0.0, %v1573
    %v1575 = vpop.f32.mrf.mxu0
    %v1576 = vadd.f32 0.0, %v1575
    %1577 = vmatmul.bf16.gmra.mxu0 %v1476
    %v1578 = vpop.f32.mrf.mxu0
    %v1579 = vadd.f32 0.0, %v1578
    %v1580 = vpop.f32.mrf.mxu0
    %v1581 = vadd.f32 0.0, %v1580
    %1582 = vmatmul.bf16.gmra.mxu0 %v1477
    %v1583 = vpop.f32.mrf.mxu0
    %v1584 = vadd.f32 0.0, %v1583
    %v1585 = vpop.f32.mrf.mxu0
    %v1586 = vadd.f32 0.0, %v1585
    %1587 = vmatmul.bf16.gmra.mxu0 %v1478
    %v1588 = vpop.f32.mrf.mxu0
    %v1589 = vadd.f32 0.0, %v1588
    %v1590 = vpop.f32.mrf.mxu0
    %v1591 = vadd.f32 0.0, %v1590
    %1592 = vdwg.mxu0
    %v1593 = vadd.f32 %v1432, %v1554
    %v1594 = vadd.f32 %v1434, %v1556
    %v1595 = vadd.f32 %v1437, %v1559
    %v1596 = vadd.f32 %v1439, %v1561
    %v1597 = vadd.f32 %v1442, %v1564
    %v1598 = vadd.f32 %v1444, %v1566
    %v1599 = vadd.f32 %v1447, %v1569
    %v1600 = vadd.f32 %v1449, %v1571
    %v1601 = vadd.f32 %v1452, %v1574
    %v1602 = vadd.f32 %v1454, %v1576
    %v1603 = vadd.f32 %v1457, %v1579
    %v1604 = vadd.f32 %v1459, %v1581
    %v1605 = vadd.f32 %v1462, %v1584
    %v1606 = vadd.f32 %v1464, %v1586
    %v1607 = vadd.f32 %v1467, %v1589
    %v1608 = vadd.f32 %v1469, %v1591
    %v1609 = vadd.f32 %v1593, %v1594
    %v1610 = vrot.slane %v1609, 4
    %v1611 = vadd.f32 %v1609, %v1610
    %v1612 = vrot.slane %v1611, 2
    %v1613 = vadd.f32 %v1611, %v1612
    %v1614 = vrot.slane %v1613, 1
    %v1615 = vadd.f32 %v1613, %v1614
    %v1616 = vadd.f32 %v1595, %v1596
    %v1617 = vrot.slane %v1616, 4
    %v1618 = vadd.f32 %v1616, %v1617
    %v1619 = vrot.slane %v1618, 2
    %v1620 = vadd.f32 %v1618, %v1619
    %v1621 = vrot.slane %v1620, 1
    %v1622 = vadd.f32 %v1620, %v1621
    %v1623 = vadd.f32 %v1597, %v1598
    %v1624 = vrot.slane %v1623, 4
    %v1625 = vadd.f32 %v1623, %v1624
    %v1626 = vrot.slane %v1625, 2
    %v1627 = vadd.f32 %v1625, %v1626
    %v1628 = vrot.slane %v1627, 1
    %v1629 = vadd.f32 %v1627, %v1628
    %v1630 = vadd.f32 %v1599, %v1600
    %v1631 = vrot.slane %v1630, 4
    %v1632 = vadd.f32 %v1630, %v1631
    %v1633 = vrot.slane %v1632, 2
    %v1634 = vadd.f32 %v1632, %v1633
    %v1635 = vrot.slane %v1634, 1
    %v1636 = vadd.f32 %v1634, %v1635
    %v1637 = vadd.f32 %v1601, %v1602
    %v1638 = vrot.slane %v1637, 4
    %v1639 = vadd.f32 %v1637, %v1638
    %v1640 = vrot.slane %v1639, 2
    %v1641 = vadd.f32 %v1639, %v1640
    %v1642 = vrot.slane %v1641, 1
    %v1643 = vadd.f32 %v1641, %v1642
    %v1644 = vadd.f32 %v1603, %v1604
    %v1645 = vrot.slane %v1644, 4
    %v1646 = vadd.f32 %v1644, %v1645
    %v1647 = vrot.slane %v1646, 2
    %v1648 = vadd.f32 %v1646, %v1647
    %v1649 = vrot.slane %v1648, 1
    %v1650 = vadd.f32 %v1648, %v1649
    %v1651 = vadd.f32 %v1605, %v1606
    %v1652 = vrot.slane %v1651, 4
    %v1653 = vadd.f32 %v1651, %v1652
    %v1654 = vrot.slane %v1653, 2
    %v1655 = vadd.f32 %v1653, %v1654
    %v1656 = vrot.slane %v1655, 1
    %v1657 = vadd.f32 %v1655, %v1656
    %v1658 = vadd.f32 %v1607, %v1608
    %v1659 = vrot.slane %v1658, 4
    %v1660 = vadd.f32 %v1658, %v1659
    %v1661 = vrot.slane %v1660, 2
    %v1662 = vadd.f32 %v1660, %v1661
    %v1663 = vrot.slane %v1662, 1
    %v1664 = vadd.f32 %v1662, %v1663
    %v1665 = vmul.f32 %v1615, 0.0625
    %v1666 = vmul.f32 %v1622, 0.0625
    %v1667 = vmul.f32 %v1629, 0.0625
    %v1668 = vmul.f32 %v1636, 0.0625
    %v1669 = vmul.f32 %v1643, 0.0625
    %v1670 = vmul.f32 %v1650, 0.0625
    %v1671 = vmul.f32 %v1657, 0.0625
    %v1672 = vmul.f32 %v1664, 0.0625
    %v1673 = vld [vmem:[%s8] sm:$0x1]
    %v1675 = vperm.slane %v1673, 0
    %v1677 = vadd.f32 %v1665, %v1675
    %v1678 = vadd.f32 %v1666, %v1675
    %v1679 = vadd.f32 %v1667, %v1675
    %v1680 = vadd.f32 %v1668, %v1675
    %v1681 = vadd.f32 %v1669, %v1675
    %v1682 = vadd.f32 %v1670, %v1675
    %v1683 = vadd.f32 %v1671, %v1675
    %v1684 = vadd.f32 %v1672, %v1675
    %v1685 = vld [vmem:[%s9] sm:$0x1]
    %v1687 = vperm.slane %v1685, 0
    %v1689 = vmul.f32 %v1677, %v1687
    %v1690 = vmul.f32 %v1678, %v1687
    %v1691 = vmul.f32 %v1679, %v1687
    %v1692 = vmul.f32 %v1680, %v1687
    %v1693 = vmul.f32 %v1681, %v1687
    %v1694 = vmul.f32 %v1682, %v1687
    %v1695 = vmul.f32 %v1683, %v1687
    %v1696 = vmul.f32 %v1684, %v1687
    %v1705 = vrot.slane %v1690, 7
    %vm1706 = vcmask 1041409
    %v1707 = vsel %vm1706, %v1705, %v1689
    %v1708 = vrot.slane %v1691, 6
    %vm1709 = vcmask 1042434
    %v1710 = vsel %vm1709, %v1708, %v1707
    %v1711 = vrot.slane %v1692, 5
    %vm1712 = vcmask 1043459
    %v1713 = vsel %vm1712, %v1711, %v1710
    %v1714 = vrot.slane %v1693, 4
    %vm1715 = vcmask 1044484
    %v1716 = vsel %vm1715, %v1714, %v1713
    %v1717 = vrot.slane %v1694, 3
    %vm1718 = vcmask 1045509
    %v1719 = vsel %vm1718, %v1717, %v1716
    %v1720 = vrot.slane %v1695, 2
    %vm1721 = vcmask 1046534
    %v1722 = vsel %vm1721, %v1720, %v1719
    %v1723 = vrot.slane %v1696, 1
    %vm1724 = vcmask 1047559
    %v1725 = vsel %vm1724, %v1723, %v1722
    %1727 = vadd.xlane.f32.xlu0 %v1725
    %v1728 = vpop.xlane.xlu0 %1727
    %v1729 = vld [vmem:[#allocation2] sm:$0x1]
    %1731 = vset.pattern.permute.xlu0 0
    %1732 = vperm.xlu0 %1731, %v1729
    %v1733 = vpop.permute.xlu0 %1732
    %v1735 = vperm.slane %v1733, 0
    %v1736 = vadd.f32 %v1728, %v1735
    %v1737 = vsub.f32 0.0, %v1736
    %v1738 = vmul.f32 %v1737, 1.442695
    %v1739 = vpow.pop %v1738
    %v1740 = vadd.f32 %v1739, 1.0
    %v1741 = vrcp.pop %v1740
    %v1742 = vmul.f32 %v1740, %v1741
    %v1743 = vsub.f32 1.0, %v1742
    %v1744 = vmul.f32 %v1741, %v1743
    %v1745 = vadd.f32 %v1741, %v1744
    %vm1746 = vweird.f32 %v1740
    %vm1747 = vweird.f32 %v1741
    %vm1748 = vmor %vm1746, %vm1747
    %v1749 = vsel %vm1748, %v1741, %v1745
    %v1750 = vand.u32 2147483647, %v1740
    %vm1751 = vcmp.eq.f32.partialorder %v1750, 8.507059e+37
    %v1752 = vand.u32 %v1740, 2147483648
    %v1753 = vor.u32 1.1754944e-38, %v1752
    %v1754 = vsel %vm1751, %v1753, %v1749
    %v1755 = vmul.f32 1.0, %v1754
    %v1757 = vlaneseq
    %v1758 = vand.u32 %v1757, 127
    %v1759 = vperm.slane %v1755, %v1758
    %vm1761 = vcmask 57344
    %1762 = vst.msk [vmem:[#allocation11] sm:$0x1] %vm1761, %v1759
    // Predicated region
    $region62: #{tpu_custom_call.1} parent=1 // pred_check
      _
    $region63: #{tpu_custom_call.1} parent=1 // pred_check_branch
      %1764 = sbr.rel (0) target = $region65
    $region64: #{tpu_custom_call.1} parent=1 // pred_region
      %1766 = vsyncadd [#allocation5], 0
      %s1768 = sshll.u32 [#allocation11], 4
      %s1769 = int_to_ptr.vmem [resolvable:$true] %s1768
      %s1770 = sshll.u32 %s11, 4
      %s1771 = int_to_ptr.hbm [resolvable:$true] %s1770
      %1773 = dma.vmem_to_hbm [thread:$0]  %s1769, 16, %s1771, [#allocation5]
    $region65: #{tpu_custom_call.1} parent=1 // pred_fallthru
      _
    // Predicated region
    $region66: #{tpu_custom_call.1} parent=1 // pred_check
      _
    $region67: #{tpu_custom_call.1} parent=1 // pred_check_branch
      %1775 = sbr.rel (0) target = $region69
    $region68: #{tpu_custom_call.1} parent=1 // pred_region
      %1777 = dma.done [#allocation5], 16
    $region69: #{tpu_custom_call.1} parent=1 // pred_fallthru
      _
    %1778 = vsyncpa [#allocation4], 1
    %1779 = vsyncpa [#allocation7], 1
    %1780 = vsyncpa [#allocation10], 1
    %1781 = vsyncpa [#allocation5], 1

</llo_original>
